<compile_context>
chip_gen: v7x
topology: tpu7x:2x2x1
jax: 0.10.0
libtpu: 0.0.40
codegen_flags: <defaults>
</compile_context>

<pallas_src>
import functools

import jax
import jax.numpy as jnp
from jax.experimental import pallas as pl
from jax.experimental.pallas import tpu as pltpu


def _round_up(x: int, m: int) -> int:
    return (x + m - 1) // m * m


def _pad2d(a, rows: int, cols: int, dtype):
    a = a.astype(dtype)
    return jnp.pad(a, ((0, rows - a.shape[0]), (0, cols - a.shape[1])))


def _fused_sage_kernel(a_ref, dinv_ref, x_ref, w1_ref, b1_ref, w2_ref, b2_ref,
                       o_ref, hw2_ref, *, tm: int):
    phase = pl.program_id(0)
    i = pl.program_id(1)

    # A_hat row stripe: int8 on the wire (dominant HBM stream, halved vs bf16),
    # values are exactly 0/1 so the cast to f32 is exact.
    a = a_ref[...].astype(jnp.float32)          # (tm, n_pad)
    d = dinv_ref[...]                           # (tm, 1) f32 row scale 1/(deg+1)

    @pl.when(phase == 0)
    def _():
        # Layer 1 for this row stripe, pre-multiplied by W2 (re-association):
        #   HW2[rows] = relu((P[rows,:] @ X) @ W1 + b1) @ W2
        # with P[rows,:] @ X == d * (A_hat[rows,:] @ X)   (exact)
        agg = d * jnp.dot(a, x_ref[...], preferred_element_type=jnp.float32)
        h = jnp.dot(agg, w1_ref[...], preferred_element_type=jnp.float32) + b1_ref[...]
        h = jnp.maximum(h, 0.0)
        hw2 = jnp.dot(h, w2_ref[...], preferred_element_type=jnp.float32)
        row0 = pl.multiple_of(i * tm, tm)
        hw2_ref[pl.ds(row0, tm), :] = hw2
        # o_ref is deliberately NOT written in phase 0: the out index_map pins
        # phase 0 to block (0,0), which phase-1 step i=0 fully overwrites
        # before any HBM writeback occurs.

    @pl.when(phase == 1)
    def _():
        # Layer 2 (re-associated): out[rows] = d * (A_hat[rows,:] @ HW2) + b2
        out = d * jnp.dot(a, hw2_ref[...], preferred_element_type=jnp.float32)
        o_ref[...] = (out + b2_ref[...]).astype(o_ref.dtype)


def sage_forward(a_hat, d_inv, x, params, *, tm: int = 256):
    """Fused 2-layer GraphSAGE ('gcn' aggregator): relu(conv1) -> conv2.

    a_hat : (N, N) int8, A + I           (a_hat[dst, src] = 1 for edge src->dst)
    d_inv : (N, 1) float32, 1/(in_degree + 1)
    """
    w1, b1, w2, b2 = params
    n = a_hat.shape[0]
    in_f, hid_f, out_f = x.shape[1], w1.shape[1], w2.shape[1]

    assert tm % 128 == 0, "tm must be a multiple of 128 (lane width of A_hat columns)"
    n_pad = _round_up(n, tm)
    in_pad = _round_up(in_f, 128)
    hid_pad = _round_up(hid_f, 128)
    out_pad = _round_up(out_f, 128)

    # Zero-padded rows/cols of A_hat and d_inv never pollute real outputs;
    # padded output rows/cols are sliced away at the end.
    a_p = _pad2d(a_hat, n_pad, n_pad, jnp.int8)
    d_p = _pad2d(d_inv.reshape(-1, 1), n_pad, 1, jnp.float32)
    x_p = _pad2d(x, n_pad, in_pad, jnp.float32)
    w1_p = _pad2d(w1, in_pad, hid_pad, jnp.float32)
    w2_p = _pad2d(w2, hid_pad, out_pad, jnp.float32)
    b1_p = _pad2d(b1.reshape(1, -1), 1, hid_pad, jnp.float32)
    b2_p = _pad2d(b2.reshape(1, -1), 1, out_pad, jnp.float32)

    n_tiles = n_pad // tm
    grid = (2, n_tiles)  # (phase, row tile); phase must be the slow axis.

    # VMEM budget from actual tile bytes with the real buffer counts.
    vmem_bytes = (
        2 * tm * n_pad * 1             # A_hat stripe, int8, double-buffered (streamed)
        + 2 * tm * 128 * 4             # d_inv stripe (lane-padded), double-buffered
        + n_pad * in_pad * 4           # X (resident, Buffered(1), f32)
        + in_pad * hid_pad * 4         # W1
        + hid_pad * out_pad * 4        # W2
        + 8 * (hid_pad + out_pad) * 4  # biases (sublane-padded)
        + 2 * tm * out_pad * 4         # output block, f32, double-buffered
        + n_pad * out_pad * 4          # HW2 scratch, f32
    )
    try:
        vmem_cap = pltpu.get_tpu_info().vmem_capacity_bytes
    except Exception:  # pragma: no cover - conservative fallback
        vmem_cap = 128 << 20
    vmem_limit = int(vmem_bytes * 1.5) + (4 << 20)
    vmem_limit = max(16 << 20, min(vmem_limit, vmem_cap - (12 << 20)))

    resident = pl.Buffered(1)  # constant-index operands: no silent double-buffering
    kernel = functools.partial(_fused_sage_kernel, tm=tm)
    out_p = pl.pallas_call(
        kernel,
        out_shape=jax.ShapeDtypeStruct((n_pad, out_pad), jnp.float32),
        grid_spec=pltpu.PrefetchScalarGridSpec(
            num_scalar_prefetch=0,
            grid=grid,
            in_specs=[
                pl.BlockSpec((tm, n_pad), lambda ph, i: (i, 0)),   # A_hat stripe (streamed)
                pl.BlockSpec((tm, 1), lambda ph, i: (i, 0)),       # d_inv stripe (streamed)
                pl.BlockSpec((n_pad, in_pad), lambda ph, i: (0, 0),
                             pipeline_mode=resident),              # X (resident)
                pl.BlockSpec((in_pad, hid_pad), lambda ph, i: (0, 0),
                             pipeline_mode=resident),              # W1
                pl.BlockSpec((1, hid_pad), lambda ph, i: (0, 0),
                             pipeline_mode=resident),              # b1
                pl.BlockSpec((hid_pad, out_pad), lambda ph, i: (0, 0),
                             pipeline_mode=resident),              # W2
                pl.BlockSpec((1, out_pad), lambda ph, i: (0, 0),
                             pipeline_mode=resident),              # b2
            ],
            # Phase 0 keeps revisiting output block 0 (never written, never
            # flushed); phase 1 writes every block exactly once.
            out_specs=pl.BlockSpec((tm, out_pad), lambda ph, i: (i * ph, 0)),
            scratch_shapes=[pltpu.VMEM((n_pad, out_pad), jnp.float32)],
        ),
        compiler_params=pltpu.CompilerParams(
            # Both "arbitrary": the two phases share the HW2 VMEM scratch, so
            # the grid must run sequentially on one core.
            dimension_semantics=("arbitrary", "arbitrary"),
            vmem_limit_bytes=vmem_limit,
        ),
    )(a_p, d_p, x_p, w1_p, b1_p, w2_p, b2_p)
    return out_p[:n, :out_f]


def build_gcn_operands(adj):
    """A_hat = A + I as int8 (exact 0/1) and d_inv = 1/(in_degree + 1) as (N,1) f32.

    P = d_inv * A_hat is the 'gcn' SAGEConv propagation matrix; keeping the row
    scale separate lets the kernel stream A_hat at 1 byte per entry.
    adj[dst, src] = 1 means an edge src -> dst (in-degree = row sum).
    """
    n = adj.shape[0]
    a_hat = adj.astype(jnp.int8) + jnp.eye(n, dtype=jnp.int8)
    deg = jnp.sum(adj.astype(jnp.float32), axis=1, keepdims=True)  # in-degree per dst
    d_inv = 1.0 / (deg + 1.0)
    return a_hat, d_inv


if __name__ == "__main__":
    # Small deterministic problem: N=300 nodes (2 row tiles with tm=256 after
    # padding), in_feats=8, hid_feats=32, out_feats=4.
    N, IN_FEATS, HID_FEATS, OUT_FEATS = 300, 8, 32, 4

    key = jax.random.PRNGKey(0)
    k_adj, k_x, k_w1, k_b1, k_w2, k_b2 = jax.random.split(key, 6)

    # Deterministic random directed graph (no self loops; A_hat adds them).
    adj = jax.random.uniform(k_adj, (N, N)) < 0.05
    adj = jnp.logical_and(adj, ~jnp.eye(N, dtype=bool))
    a_hat, d_inv = build_gcn_operands(adj)

    x = jax.random.normal(k_x, (N, IN_FEATS), dtype=jnp.float32)
    w1 = jax.random.normal(k_w1, (IN_FEATS, HID_FEATS), dtype=jnp.float32) * 0.1
    b1 = jax.random.normal(k_b1, (HID_FEATS,), dtype=jnp.float32) * 0.1
    w2 = jax.random.normal(k_w2, (HID_FEATS, OUT_FEATS), dtype=jnp.float32) * 0.1
    b2 = jax.random.normal(k_b2, (OUT_FEATS,), dtype=jnp.float32) * 0.1
    params = (w1, b1, w2, b2)

    out = jax.jit(sage_forward)(a_hat, d_inv, x, params)
    out = jax.block_until_ready(out)
    assert out.shape == (N, OUT_FEATS)

    # Pure-f32 reference of the original formulation:
    #   P = (A + I) / (in_deg + 1);  out = (P @ relu((P @ X) @ W1 + b1)) @ W2 + b2
    p_ref = a_hat.astype(jnp.float32) * d_inv
    h_ref = jnp.maximum((p_ref @ x) @ w1 + b1, 0.0)
    ref = (p_ref @ h_ref) @ w2 + b2
    assert jnp.allclose(out, ref, atol=5e-2, rtol=5e-2), float(jnp.max(jnp.abs(out - ref)))

    print("KERNEL_OK")
</pallas_src>

<mosaic_0001>
module attributes {stable_mosaic.version = 11 : i64} {
  func.func @_fused_sage_kernel(%arg0: i32, %arg1: i32, %arg2: memref<256x512xi8, #tpu.memory_space<vmem>>, %arg3: memref<256x1xf32, #tpu.memory_space<vmem>>, %arg4: memref<512x128xf32, #tpu.memory_space<vmem>>, %arg5: memref<128x128xf32, #tpu.memory_space<vmem>>, %arg6: memref<1x128xf32, #tpu.memory_space<vmem>>, %arg7: memref<128x128xf32, #tpu.memory_space<vmem>>, %arg8: memref<1x128xf32, #tpu.memory_space<vmem>>, %arg9: memref<256x128xf32, #tpu.memory_space<vmem>>, %arg10: memref<512x128xf32, #tpu.memory_space<vmem>>) attributes {dimension_semantics = [#tpu.dimension_semantics<arbitrary>, #tpu.dimension_semantics<arbitrary>], iteration_bounds = array<i64: 2, 2>, scalar_prefetch = 0 : i64, scratch_operands = 1 : i64, tpu.core_type = #tpu.core_type<tc>, window_params = [{transform_indices = @transform_0, window_bounds = array<i64: 256, 512>}, {transform_indices = @transform_1, window_bounds = array<i64: 256, 1>}, {pipeline_mode = #tpu.pipeline_mode<synchronous>, transform_indices = @transform_2, window_bounds = array<i64: 512, 128>}, {pipeline_mode = #tpu.pipeline_mode<synchronous>, transform_indices = @transform_3, window_bounds = array<i64: 128, 128>}, {pipeline_mode = #tpu.pipeline_mode<synchronous>, transform_indices = @transform_4, window_bounds = array<i64: 1, 128>}, {pipeline_mode = #tpu.pipeline_mode<synchronous>, transform_indices = @transform_5, window_bounds = array<i64: 128, 128>}, {pipeline_mode = #tpu.pipeline_mode<synchronous>, transform_indices = @transform_6, window_bounds = array<i64: 1, 128>}, {transform_indices = @transform_7, window_bounds = array<i64: 256, 128>}]} {
    %c0 = arith.constant 0 : index
    %c0_0 = arith.constant 0 : index
    %0 = vector.load %arg2[%c0, %c0_0] : memref<256x512xi8, #tpu.memory_space<vmem>>, vector<256x512xi8>
    %1 = arith.sitofp %0 : vector<256x512xi8> to vector<256x512xf32>
    %c0_1 = arith.constant 0 : index
    %c0_2 = arith.constant 0 : index
    %2 = vector.load %arg3[%c0_1, %c0_2] : memref<256x1xf32, #tpu.memory_space<vmem>>, vector<256x1xf32>
    %c0_i32 = arith.constant 0 : i32
    %3 = arith.cmpi eq, %arg0, %c0_i32 : i32
    %4 = arith.extui %3 : i1 to i32
    %c0_i32_3 = arith.constant 0 : i32
    %5 = arith.cmpi ne, %4, %c0_i32_3 : i32
    scf.if %5 {
      %c0_5 = arith.constant 0 : index
      %c0_6 = arith.constant 0 : index
      %9 = vector.load %arg4[%c0_5, %c0_6] : memref<512x128xf32, #tpu.memory_space<vmem>>, vector<512x128xf32>
      %cst = arith.constant dense<0.000000e+00> : vector<256x128xf32>
      %10 = tpu.matmul %1, %9, %cst {dimension_numbers = #tpu.dot_dimension_numbers<[1], [0], [0], [1], [0, 0, 1, 1], [], []>} : vector<256x512xf32>, vector<512x128xf32>, vector<256x128xf32> -> vector<256x128xf32>
      %11 = vector.broadcast %2 : vector<256x1xf32> to vector<256x128xf32>
      %12 = arith.mulf %11, %10 : vector<256x128xf32>
      %c0_7 = arith.constant 0 : index
      %c0_8 = arith.constant 0 : index
      %13 = vector.load %arg5[%c0_7, %c0_8] : memref<128x128xf32, #tpu.memory_space<vmem>>, vector<128x128xf32>
      %cst_9 = arith.constant dense<0.000000e+00> : vector<256x128xf32>
      %14 = tpu.matmul %12, %13, %cst_9 {dimension_numbers = #tpu.dot_dimension_numbers<[1], [0], [0], [1], [0, 0, 1, 1], [], []>} : vector<256x128xf32>, vector<128x128xf32>, vector<256x128xf32> -> vector<256x128xf32>
      %c0_10 = arith.constant 0 : index
      %c0_11 = arith.constant 0 : index
      %15 = vector.load %arg6[%c0_10, %c0_11] : memref<1x128xf32, #tpu.memory_space<vmem>>, vector<1x128xf32>
      %16 = vector.broadcast %15 : vector<1x128xf32> to vector<256x128xf32>
      %17 = arith.addf %14, %16 : vector<256x128xf32>
      %cst_12 = arith.constant 0.000000e+00 : f32
      %18 = vector.broadcast %cst_12 : f32 to vector<256x128xf32>
      %19 = arith.maximumf %17, %18 : vector<256x128xf32>
      %c0_13 = arith.constant 0 : index
      %c0_14 = arith.constant 0 : index
      %20 = vector.load %arg7[%c0_13, %c0_14] : memref<128x128xf32, #tpu.memory_space<vmem>>, vector<128x128xf32>
      %cst_15 = arith.constant dense<0.000000e+00> : vector<256x128xf32>
      %21 = tpu.matmul %19, %20, %cst_15 {dimension_numbers = #tpu.dot_dimension_numbers<[1], [0], [0], [1], [0, 0, 1, 1], [], []>} : vector<256x128xf32>, vector<128x128xf32>, vector<256x128xf32> -> vector<256x128xf32>
      %c256_i32 = arith.constant 256 : i32
      %22 = arith.muli %arg1, %c256_i32 : i32
      %23 = tpu.assume_multiple %22, 256 : i32
      %24 = arith.index_cast %23 : i32 to index
      %c0_16 = arith.constant 0 : index
      %25 = vector.load %arg10[%24, %c0_16] : memref<512x128xf32, #tpu.memory_space<vmem>>, vector<256x128xf32>
      tpu.vector_store %arg10[%24, %c0_16], %21 {strides = array<i32>} : memref<512x128xf32, #tpu.memory_space<vmem>>, vector<256x128xf32>,
    } else {
    }
    %c1_i32 = arith.constant 1 : i32
    %6 = arith.cmpi eq, %arg0, %c1_i32 : i32
    %7 = arith.extui %6 : i1 to i32
    %c0_i32_4 = arith.constant 0 : i32
    %8 = arith.cmpi ne, %7, %c0_i32_4 : i32
    scf.if %8 {
      %c0_5 = arith.constant 0 : index
      %c0_6 = arith.constant 0 : index
      %9 = vector.load %arg10[%c0_5, %c0_6] : memref<512x128xf32, #tpu.memory_space<vmem>>, vector<512x128xf32>
      %cst = arith.constant dense<0.000000e+00> : vector<256x128xf32>
      %10 = tpu.matmul %1, %9, %cst {dimension_numbers = #tpu.dot_dimension_numbers<[1], [0], [0], [1], [0, 0, 1, 1], [], []>} : vector<256x512xf32>, vector<512x128xf32>, vector<256x128xf32> -> vector<256x128xf32>
      %11 = vector.broadcast %2 : vector<256x1xf32> to vector<256x128xf32>
      %12 = arith.mulf %11, %10 : vector<256x128xf32>
      %c0_7 = arith.constant 0 : index
      %c0_8 = arith.constant 0 : index
      %13 = vector.load %arg8[%c0_7, %c0_8] : memref<1x128xf32, #tpu.memory_space<vmem>>, vector<1x128xf32>
      %14 = vector.broadcast %13 : vector<1x128xf32> to vector<256x128xf32>
      %15 = arith.addf %12, %14 : vector<256x128xf32>
      %c0_9 = arith.constant 0 : index
      %c0_10 = arith.constant 0 : index
      %16 = vector.load %arg9[%c0_9, %c0_10] : memref<256x128xf32, #tpu.memory_space<vmem>>, vector<256x128xf32>
      tpu.vector_store %arg9[%c0_9, %c0_10], %15 {strides = array<i32>} : memref<256x128xf32, #tpu.memory_space<vmem>>, vector<256x128xf32>,
    } else {
    }
    return
  }
  func.func @transform_0(%arg0: i32, %arg1: i32) -> (i32, i32) {
    %c0_i32 = arith.constant 0 : i32
    %c0_i32_0 = arith.constant 0 : i32
    return %arg1, %c0_i32 : i32, i32
  }
  func.func @transform_1(%arg0: i32, %arg1: i32) -> (i32, i32) {
    %c0_i32 = arith.constant 0 : i32
    %c0_i32_0 = arith.constant 0 : i32
    return %arg1, %c0_i32 : i32, i32
  }
  func.func @transform_2(%arg0: i32, %arg1: i32) -> (i32, i32) {
    %c0_i32 = arith.constant 0 : i32
    %c0_i32_0 = arith.constant 0 : i32
    %c0_i32_1 = arith.constant 0 : i32
    return %c0_i32, %c0_i32_0 : i32, i32
  }
  func.func @transform_3(%arg0: i32, %arg1: i32) -> (i32, i32) {
    %c0_i32 = arith.constant 0 : i32
    %c0_i32_0 = arith.constant 0 : i32
    %c0_i32_1 = arith.constant 0 : i32
    return %c0_i32, %c0_i32_0 : i32, i32
  }
  func.func @transform_4(%arg0: i32, %arg1: i32) -> (i32, i32) {
    %c0_i32 = arith.constant 0 : i32
    %c0_i32_0 = arith.constant 0 : i32
    %c0_i32_1 = arith.constant 0 : i32
    return %c0_i32, %c0_i32_0 : i32, i32
  }
  func.func @transform_5(%arg0: i32, %arg1: i32) -> (i32, i32) {
    %c0_i32 = arith.constant 0 : i32
    %c0_i32_0 = arith.constant 0 : i32
    %c0_i32_1 = arith.constant 0 : i32
    return %c0_i32, %c0_i32_0 : i32, i32
  }
  func.func @transform_6(%arg0: i32, %arg1: i32) -> (i32, i32) {
    %c0_i32 = arith.constant 0 : i32
    %c0_i32_0 = arith.constant 0 : i32
    %c0_i32_1 = arith.constant 0 : i32
    return %c0_i32, %c0_i32_0 : i32, i32
  }
  func.func @transform_7(%arg0: i32, %arg1: i32) -> (i32, i32) {
    %0 = arith.muli %arg1, %arg0 : i32
    %c0_i32 = arith.constant 0 : i32
    %c0_i32_0 = arith.constant 0 : i32
    return %0, %c0_i32 : i32, i32
  }
}

</mosaic_0001>

<llo_original>
// kernel: sage_forward.1
$region0: #{sage_forward.1}
  #allocation0 [shape = 'u32[]', space=smem, size = 0x4, offset = 0x4, fixed_abs, tag = 'smem constant byte address 0x4 - core index']
  #allocation1 [shape = 'u32[144,128]{1,0:T(1,128)}', space=vmem, size = 0x12000, scoped, tag = 'internal scratch']
  #allocation2 [shape = 'f32[512,128]{1,0:T(8,128)}', space=vmem, size = 0x40000, scoped, tag = 'scratch operand']
  %s0 = inlined_call_operand.vmem [shape: s8[512,512], index: 0, kind: input, shape index: {}]
  %s1 = inlined_call_operand.vmem [shape: f32[512,1], index: 1, kind: input, shape index: {}]
  %s2 = inlined_call_operand.vmem [shape: f32[512,128], index: 2, kind: input, shape index: {}]
  %s3 = inlined_call_operand.vmem [shape: f32[128,128], index: 3, kind: input, shape index: {}]
  %s4 = inlined_call_operand.vmem [shape: f32[1,128], index: 4, kind: input, shape index: {}]
  %s5 = inlined_call_operand.vmem [shape: f32[128,128], index: 5, kind: input, shape index: {}]
  %s6 = inlined_call_operand.vmem [shape: f32[1,128], index: 6, kind: input, shape index: {}]
  %s7 = inlined_call_operand.vmem [shape: f32[512,128], index: 7, kind: output, shape index: {}]
  %s8 = sld [smem:[#allocation0]]
  $region69: #{sage_forward.1} parent=0
    _
  %s10 = ssub.s32 1, %s8
  %s11 = scalar_select 0, %s10, %s8
  loop: start=0, step=1, limit=6
  $region2: #{sage_forward.1} parent=0 // loop_pre_header
    _
  $region3: #{sage_forward.1} parent=0 // loop_header
    %s13 = sphi 0, %s17
    %p14 = scmp.ge.s32.totalorder %s13, 6
    %s20 = sphi 0, %s32
    %s21 = sphi 0, %s28
    %s22 = sphi 0, %s20
    %s23 = sphi 0, %s21
    %s24 = sphi 0, %s22
    %s25 = sphi 0, %s23
    %s35 = sphi 0, %s37
    %s38 = sphi 0, %s35
    %s39 = sphi 0, %s38
    %s55 = sphi 0, %s39
    %s61 = sphi 0, %s63
    %s64 = sphi 0, %s61
    %s65 = sphi 0, %s64
    %s81 = sphi 0, %s65
    %s85 = sphi 0, %s85
    %s87 = sphi 0, %s85
    %s88 = sphi 0, %s87
    %s102 = sphi 0, %s88
    %s106 = sphi 0, %s106
    %s108 = sphi 0, %s106
    %s109 = sphi 0, %s108
    %s123 = sphi 0, %s109
    %s127 = sphi 0, %s127
    %s129 = sphi 0, %s127
    %s130 = sphi 0, %s129
    %s144 = sphi 0, %s130
    %s148 = sphi 0, %s148
    %s150 = sphi 0, %s148
    %s151 = sphi 0, %s150
    %s165 = sphi 0, %s151
    %s169 = sphi 0, %s169
    %s171 = sphi 0, %s169
    %s172 = sphi 0, %s171
    %s186 = sphi 0, %s172
    %s194 = sphi 0, %s196
    %s197 = sphi 0, %s194
    %s198 = sphi 0, %s197
    %s214 = sphi 0, %s198
  $region4: #{sage_forward.1} parent=0 // loop_header_branch
    %16 = sbr.rel (%p14) target = $region8
  $region5: #{sage_forward.1} parent=0 // loop_body
    %s18 = ssub.s32 %s13, 1
    %s19 = ssub.s32 %s13, 2
    %s26 = sadd.s32 1, %s21
    %p27 = scmp.ge.s32.totalorder %s26, 2
    %s28 = scalar_select %p27, 0, %s26
    %s29 = sadd.s32 1, %s20
    %s30 = scalar_select %p27, %s29, %s20
    %p31 = scmp.ge.s32.totalorder %s30, 2
    %s32 = scalar_select %p31, 0, %s30
    %s33 = ssub.s32 %s21, %s28
    %p34 = scmp.eq.s32.totalorder %s33, 0
    %s36 = sadd.s32 %s35, 1
    %s37 = scalar_select %p34, %s35, %s36
    %p40 = pneg %p34
    %p41 = scmp.eq.s32.totalorder %s13, 3
    %p42 = por %p40, %p41
    %p43 = scmp.ne.s32.totalorder %s35, %s38
    %p44 = scmp.eq.s32.totalorder %s13, 0
    %p45 = por %p43, %p44
    %p46 = scmp.ne.s32.totalorder %s35, %s38
    %p47 = scmp.eq.s32.totalorder %s18, 3
    %p48 = por %p46, %p47
    %p49 = scmp.ne.s32.totalorder %s38, %s39
    %p50 = scmp.eq.s32.totalorder %s18, 0
    %p51 = por %p49, %p50
    %p52 = scmp.ne.s32.totalorder %s38, %s39
    %p53 = scmp.eq.s32.totalorder %s19, 3
    %p54 = por %p52, %p53
    %p56 = scmp.ne.s32.totalorder %s39, %s55
    %p57 = scmp.eq.s32.totalorder %s19, 0
    %p58 = por %p56, %p57
    %s59 = ssub.s32 %s21, %s28
    %p60 = scmp.eq.s32.totalorder %s59, 0
    %s62 = sadd.s32 %s61, 1
    %s63 = scalar_select %p60, %s61, %s62
    %p66 = pneg %p60
    %p67 = scmp.eq.s32.totalorder %s13, 3
    %p68 = por %p66, %p67
    %p69 = scmp.ne.s32.totalorder %s61, %s64
    %p70 = scmp.eq.s32.totalorder %s13, 0
    %p71 = por %p69, %p70
    %p72 = scmp.ne.s32.totalorder %s61, %s64
    %p73 = scmp.eq.s32.totalorder %s18, 3
    %p74 = por %p72, %p73
    %p75 = scmp.ne.s32.totalorder %s64, %s65
    %p76 = scmp.eq.s32.totalorder %s18, 0
    %p77 = por %p75, %p76
    %p78 = scmp.ne.s32.totalorder %s64, %s65
    %p79 = scmp.eq.s32.totalorder %s19, 3
    %p80 = por %p78, %p79
    %p82 = scmp.ne.s32.totalorder %s65, %s81
    %p83 = scmp.eq.s32.totalorder %s19, 0
    %p84 = por %p82, %p83
    %s86 = sadd.s32 %s85, 1
    %p89 = scmp.eq.s32.totalorder %s13, 3
    %p90 = scmp.ne.s32.totalorder %s85, %s87
    %p91 = scmp.eq.s32.totalorder %s13, 0
    %p92 = por %p90, %p91
    %p93 = scmp.ne.s32.totalorder %s85, %s87
    %p94 = scmp.eq.s32.totalorder %s18, 3
    %p95 = por %p93, %p94
    %p96 = scmp.ne.s32.totalorder %s87, %s88
    %p97 = scmp.eq.s32.totalorder %s18, 0
    %p98 = por %p96, %p97
    %p99 = scmp.ne.s32.totalorder %s87, %s88
    %p100 = scmp.eq.s32.totalorder %s19, 3
    %p101 = por %p99, %p100
    %p103 = scmp.ne.s32.totalorder %s88, %s102
    %p104 = scmp.eq.s32.totalorder %s19, 0
    %p105 = por %p103, %p104
    %s107 = sadd.s32 %s106, 1
    %p110 = scmp.eq.s32.totalorder %s13, 3
    %p111 = scmp.ne.s32.totalorder %s106, %s108
    %p112 = scmp.eq.s32.totalorder %s13, 0
    %p113 = por %p111, %p112
    %p114 = scmp.ne.s32.totalorder %s106, %s108
    %p115 = scmp.eq.s32.totalorder %s18, 3
    %p116 = por %p114, %p115
    %p117 = scmp.ne.s32.totalorder %s108, %s109
    %p118 = scmp.eq.s32.totalorder %s18, 0
    %p119 = por %p117, %p118
    %p120 = scmp.ne.s32.totalorder %s108, %s109
    %p121 = scmp.eq.s32.totalorder %s19, 3
    %p122 = por %p120, %p121
    %p124 = scmp.ne.s32.totalorder %s109, %s123
    %p125 = scmp.eq.s32.totalorder %s19, 0
    %p126 = por %p124, %p125
    %s128 = sadd.s32 %s127, 1
    %p131 = scmp.eq.s32.totalorder %s13, 3
    %p132 = scmp.ne.s32.totalorder %s127, %s129
    %p133 = scmp.eq.s32.totalorder %s13, 0
    %p134 = por %p132, %p133
    %p135 = scmp.ne.s32.totalorder %s127, %s129
    %p136 = scmp.eq.s32.totalorder %s18, 3
    %p137 = por %p135, %p136
    %p138 = scmp.ne.s32.totalorder %s129, %s130
    %p139 = scmp.eq.s32.totalorder %s18, 0
    %p140 = por %p138, %p139
    %p141 = scmp.ne.s32.totalorder %s129, %s130
    %p142 = scmp.eq.s32.totalorder %s19, 3
    %p143 = por %p141, %p142
    %p145 = scmp.ne.s32.totalorder %s130, %s144
    %p146 = scmp.eq.s32.totalorder %s19, 0
    %p147 = por %p145, %p146
    %s149 = sadd.s32 %s148, 1
    %p152 = scmp.eq.s32.totalorder %s13, 3
    %p153 = scmp.ne.s32.totalorder %s148, %s150
    %p154 = scmp.eq.s32.totalorder %s13, 0
    %p155 = por %p153, %p154
    %p156 = scmp.ne.s32.totalorder %s148, %s150
    %p157 = scmp.eq.s32.totalorder %s18, 3
    %p158 = por %p156, %p157
    %p159 = scmp.ne.s32.totalorder %s150, %s151
    %p160 = scmp.eq.s32.totalorder %s18, 0
    %p161 = por %p159, %p160
    %p162 = scmp.ne.s32.totalorder %s150, %s151
    %p163 = scmp.eq.s32.totalorder %s19, 3
    %p164 = por %p162, %p163
    %p166 = scmp.ne.s32.totalorder %s151, %s165
    %p167 = scmp.eq.s32.totalorder %s19, 0
    %p168 = por %p166, %p167
    %s170 = sadd.s32 %s169, 1
    %p173 = scmp.eq.s32.totalorder %s13, 3
    %p174 = scmp.ne.s32.totalorder %s169, %s171
    %p175 = scmp.eq.s32.totalorder %s13, 0
    %p176 = por %p174, %p175
    %p177 = scmp.ne.s32.totalorder %s169, %s171
    %p178 = scmp.eq.s32.totalorder %s18, 3
    %p179 = por %p177, %p178
    %p180 = scmp.ne.s32.totalorder %s171, %s172
    %p181 = scmp.eq.s32.totalorder %s18, 0
    %p182 = por %p180, %p181
    %p183 = scmp.ne.s32.totalorder %s171, %s172
    %p184 = scmp.eq.s32.totalorder %s19, 3
    %p185 = por %p183, %p184
    %p187 = scmp.ne.s32.totalorder %s172, %s186
    %p188 = scmp.eq.s32.totalorder %s19, 0
    %p189 = por %p187, %p188
    %s190 = smul.u32 %s21, %s20
    %s191 = smul.u32 %s28, %s32
    %s192 = ssub.s32 %s190, %s191
    %p193 = scmp.eq.s32.totalorder %s192, 0
    %s195 = sadd.s32 %s194, 1
    %s196 = scalar_select %p193, %s194, %s195
    %p199 = pneg %p193
    %p200 = scmp.eq.s32.totalorder %s13, 3
    %p201 = por %p199, %p200
    %p202 = scmp.ne.s32.totalorder %s194, %s197
    %p203 = scmp.eq.s32.totalorder %s13, 0
    %p204 = por %p202, %p203
    %p205 = scmp.ne.s32.totalorder %s194, %s197
    %p206 = scmp.eq.s32.totalorder %s18, 3
    %p207 = por %p205, %p206
    %p208 = scmp.ne.s32.totalorder %s197, %s198
    %p209 = scmp.eq.s32.totalorder %s18, 0
    %p210 = por %p208, %p209
    %p211 = scmp.ne.s32.totalorder %s197, %s198
    %p212 = scmp.eq.s32.totalorder %s19, 3
    %p213 = por %p211, %p212
    %p215 = scmp.ne.s32.totalorder %s198, %s214
    %p216 = scmp.eq.s32.totalorder %s19, 0
    %p217 = por %p215, %p216
    %p218 = scmp.le.s32.totalorder 1, %s13
    %p219 = scmp.lt.s32.totalorder %s13, 5
    %p220 = pnand %p218, %p219
    %p221 = pneg %p220
    // Predicated region
    $region9: #{sage_forward.1} parent=5 // pred_check
      _
    $region10: #{sage_forward.1} parent=5 // pred_check_branch
      %223 = sbr.rel (%p220) target = $region12
    $region11: #{sage_forward.1} parent=5 // pred_region
      %s224 = ssub.s32 %s13, 1
      // Predicated region
      $region13: #{sage_forward.1} parent=11 // pred_check
        %p225 = pneg %p98
      $region14: #{sage_forward.1} parent=11 // pred_check_branch
        %227 = sbr.rel (%p225) target = $region16
      $region15: #{sage_forward.1} parent=11 // pred_region
        _
      $region16: #{sage_forward.1} parent=11 // pred_fallthru
        _
      // Predicated region
      $region17: #{sage_forward.1} parent=11 // pred_check
        %p228 = pneg %p119
      $region18: #{sage_forward.1} parent=11 // pred_check_branch
        %230 = sbr.rel (%p228) target = $region20
      $region19: #{sage_forward.1} parent=11 // pred_region
        _
      $region20: #{sage_forward.1} parent=11 // pred_fallthru
        _
      // Predicated region
      $region21: #{sage_forward.1} parent=11 // pred_check
        %p231 = pneg %p140
      $region22: #{sage_forward.1} parent=11 // pred_check_branch
        %233 = sbr.rel (%p231) target = $region24
      $region23: #{sage_forward.1} parent=11 // pred_region
        _
      $region24: #{sage_forward.1} parent=11 // pred_fallthru
        _
      // Predicated region
      $region25: #{sage_forward.1} parent=11 // pred_check
        %p234 = pneg %p161
      $region26: #{sage_forward.1} parent=11 // pred_check_branch
        %236 = sbr.rel (%p234) target = $region28
      $region27: #{sage_forward.1} parent=11 // pred_region
        _
      $region28: #{sage_forward.1} parent=11 // pred_fallthru
        _
      // Predicated region
      $region29: #{sage_forward.1} parent=11 // pred_check
        %p237 = pneg %p182
      $region30: #{sage_forward.1} parent=11 // pred_check_branch
        %239 = sbr.rel (%p237) target = $region32
      $region31: #{sage_forward.1} parent=11 // pred_region
        _
      $region32: #{sage_forward.1} parent=11 // pred_fallthru
        _
    $region12: #{sage_forward.1} parent=5 // pred_fallthru
      _
    %p240 = scmp.lt.s32.totalorder %s13, 4
    // Predicated region
    $region33: #{sage_forward.1} parent=5 // pred_check
      %p241 = pneg %p240
    $region34: #{sage_forward.1} parent=5 // pred_check_branch
      %243 = sbr.rel (%p241) target = $region36
    $region35: #{sage_forward.1} parent=5 // pred_region
      // Predicated region
      $region37: #{sage_forward.1} parent=35 // pred_check
        %p244 = pneg %p45
      $region38: #{sage_forward.1} parent=35 // pred_check_branch
        %246 = sbr.rel (%p244) target = $region40
      $region39: #{sage_forward.1} parent=35 // pred_region
        %s247 = smul.u32 8, %s21
        %p248 = scmp.lt.s32.totalorder %s247, 15
        %s249 = scalar_select %p248, %s247, 15
        %s250 = smul.addr %s249, 4
        %s251 = smul.addr %s250, 8
        %s252 = scalar_lea.vmem %s0, %s251
        %s253 = smul.u32 8, %s21
      $region40: #{sage_forward.1} parent=35 // pred_fallthru
        _
      // Predicated region
      $region41: #{sage_forward.1} parent=35 // pred_check
        %p254 = pneg %p71
      $region42: #{sage_forward.1} parent=35 // pred_check_branch
        %256 = sbr.rel (%p254) target = $region44
      $region43: #{sage_forward.1} parent=35 // pred_region
        %s257 = smul.u32 32, %s21
        %p258 = scmp.lt.s32.totalorder %s257, 63
        %s259 = scalar_select %p258, %s257, 63
        %s260 = smul.addr %s259, 8
        %s261 = scalar_lea.vmem %s1, %s260
        %s262 = smul.u32 32, %s21
      $region44: #{sage_forward.1} parent=35 // pred_fallthru
        _
    $region36: #{sage_forward.1} parent=5 // pred_fallthru
      _
    %p263 = scmp.le.s32.totalorder 1, %s13
    %p264 = scmp.lt.s32.totalorder %s13, 5
    %p265 = pnand %p263, %p264
    %p266 = pneg %p265
    // Predicated region
    $region45: #{sage_forward.1} parent=5 // pred_check
      _
    $region46: #{sage_forward.1} parent=5 // pred_check_branch
      %268 = sbr.rel (%p265) target = $region48
    $region47: #{sage_forward.1} parent=5 // pred_region
      %s269 = ssub.s32 %s13, 1
      %s270 = smul.u32 8, %s23
      %p271 = scmp.lt.s32.totalorder %s270, 15
      %s272 = scalar_select %p271, %s270, 15
      %s273 = smul.addr %s272, 4
      %s274 = smul.addr %s273, 8
      %s275 = scalar_lea.vmem %s0, %s274
      %p276 = pneg %p51
      %p277 = pneg %p48
      %s278 = smul.u32 32, %s23
      %p279 = scmp.lt.s32.totalorder %s278, 63
      %s280 = scalar_select %p279, %s278, 63
      %s281 = smul.addr %s280, 8
      %s282 = scalar_lea.vmem %s1, %s281
      %p283 = pneg %p77
      %p284 = pneg %p74
      %p285 = pneg %p98
      %p286 = pneg %p95
      %p287 = pneg %p119
      %p288 = pneg %p116
      %p289 = pneg %p140
      %p290 = pneg %p137
      %p291 = pneg %p161
      %p292 = pneg %p158
      %p293 = pneg %p182
      %p294 = pneg %p179
      %p295 = pneg %p210
      %p296 = pneg %p207
      %s297 = smul.u32 %s23, %s22
      %s298 = smul.u32 32, %s297
      %p299 = scmp.lt.s32.totalorder %s298, 63
      %s300 = scalar_select %p299, %s298, 63
      %s301 = smul.addr %s300, 8
      %s302 = scalar_lea.vmem %s7, %s301
      %s303 = smul.u32 8, %s23
      %p304 = scmp.lt.s32.totalorder %s303, 15
      %s305 = scalar_select %p304, %s303, 15
      %s306 = smul.addr %s305, 4
      %s307 = smul.addr %s306, 8
      %s308 = scalar_lea.vmem %s0, %s307
      %s309 = smul.u32 8, %s23
      %s310 = smul.u32 32, %s23
      %p311 = scmp.lt.s32.totalorder %s310, 63
      %s312 = scalar_select %p311, %s310, 63
      %s313 = smul.addr %s312, 8
      %s314 = scalar_lea.vmem %s1, %s313
      %s315 = smul.u32 32, %s23
      %s316 = smul.u32 %s23, %s22
      %s317 = smul.u32 32, %s316
      %p318 = scmp.lt.s32.totalorder %s317, 63
      %s319 = scalar_select %p318, %s317, 63
      %s320 = smul.addr %s319, 8
      %s321 = scalar_lea.vmem %s7, %s320
      %s322 = smul.u32 %s23, %s22
      %s323 = smul.u32 32, %s322
      %v324 = vld [vmem:[%s308] sm:$0xff]
      %v325 = vld [vmem:[%s308 + $0x8] sm:$0xff]
      %v326 = vld [vmem:[%s308 + $0x10] sm:$0xff]
      %v327 = vld [vmem:[%s308 + $0x18] sm:$0xff]
      %v328 = vld [vmem:[%s308 + $0x20] sm:$0xff]
      %v329 = vld [vmem:[%s308 + $0x28] sm:$0xff]
      %v330 = vld [vmem:[%s308 + $0x30] sm:$0xff]
      %v331 = vld [vmem:[%s308 + $0x38] sm:$0xff]
      %v332 = vld [vmem:[%s308 + $0x40] sm:$0xff]
      %v333 = vld [vmem:[%s308 + $0x48] sm:$0xff]
      %v334 = vld [vmem:[%s308 + $0x50] sm:$0xff]
      %v335 = vld [vmem:[%s308 + $0x58] sm:$0xff]
      %v336 = vld [vmem:[%s308 + $0x60] sm:$0xff]
      %v337 = vld [vmem:[%s308 + $0x68] sm:$0xff]
      %v338 = vld [vmem:[%s308 + $0x70] sm:$0xff]
      %v339 = vld [vmem:[%s308 + $0x78] sm:$0xff]
      %v340 = vld [vmem:[%s308 + $0x80] sm:$0xff]
      %v341 = vld [vmem:[%s308 + $0x88] sm:$0xff]
      %v342 = vld [vmem:[%s308 + $0x90] sm:$0xff]
      %v343 = vld [vmem:[%s308 + $0x98] sm:$0xff]
      %v344 = vld [vmem:[%s308 + $0xa0] sm:$0xff]
      %v345 = vld [vmem:[%s308 + $0xa8] sm:$0xff]
      %v346 = vld [vmem:[%s308 + $0xb0] sm:$0xff]
      %v347 = vld [vmem:[%s308 + $0xb8] sm:$0xff]
      %v348 = vld [vmem:[%s308 + $0xc0] sm:$0xff]
      %v349 = vld [vmem:[%s308 + $0xc8] sm:$0xff]
      %v350 = vld [vmem:[%s308 + $0xd0] sm:$0xff]
      %v351 = vld [vmem:[%s308 + $0xd8] sm:$0xff]
      %v352 = vld [vmem:[%s308 + $0xe0] sm:$0xff]
      %v353 = vld [vmem:[%s308 + $0xe8] sm:$0xff]
      %v354 = vld [vmem:[%s308 + $0xf0] sm:$0xff]
      %v355 = vld [vmem:[%s308 + $0xf8] sm:$0xff]
      %v356 = vunpack.c.0.s8 %v324
      %v357 = vunpack.c.0.s8 %v325
      %v358 = vunpack.c.0.s8 %v326
      %v359 = vunpack.c.0.s8 %v327
      %v360 = vunpack.c.1.s8 %v324
      %v361 = vunpack.c.1.s8 %v325
      %v362 = vunpack.c.1.s8 %v326
      %v363 = vunpack.c.1.s8 %v327
      %v364 = vunpack.c.2.s8 %v324
      %v365 = vunpack.c.2.s8 %v325
      %v366 = vunpack.c.2.s8 %v326
      %v367 = vunpack.c.2.s8 %v327
      %v368 = vunpack.c.3.s8 %v324
      %v369 = vunpack.c.3.s8 %v325
      %v370 = vunpack.c.3.s8 %v326
      %v371 = vunpack.c.3.s8 %v327
      %v372 = vunpack.c.0.s8 %v328
      %v373 = vunpack.c.0.s8 %v329
      %v374 = vunpack.c.0.s8 %v330
      %v375 = vunpack.c.0.s8 %v331
      %v376 = vunpack.c.1.s8 %v328
      %v377 = vunpack.c.1.s8 %v329
      %v378 = vunpack.c.1.s8 %v330
      %v379 = vunpack.c.1.s8 %v331
      %v380 = vunpack.c.2.s8 %v328
      %v381 = vunpack.c.2.s8 %v329
      %v382 = vunpack.c.2.s8 %v330
      %v383 = vunpack.c.2.s8 %v331
      %v384 = vunpack.c.3.s8 %v328
      %v385 = vunpack.c.3.s8 %v329
      %v386 = vunpack.c.3.s8 %v330
      %v387 = vunpack.c.3.s8 %v331
      %v388 = vunpack.c.0.s8 %v332
      %v389 = vunpack.c.0.s8 %v333
      %v390 = vunpack.c.0.s8 %v334
      %v391 = vunpack.c.0.s8 %v335
      %v392 = vunpack.c.1.s8 %v332
      %v393 = vunpack.c.1.s8 %v333
      %v394 = vunpack.c.1.s8 %v334
      %v395 = vunpack.c.1.s8 %v335
      %v396 = vunpack.c.2.s8 %v332
      %v397 = vunpack.c.2.s8 %v333
      %v398 = vunpack.c.2.s8 %v334
      %v399 = vunpack.c.2.s8 %v335
      %v400 = vunpack.c.3.s8 %v332
      %v401 = vunpack.c.3.s8 %v333
      %v402 = vunpack.c.3.s8 %v334
      %v403 = vunpack.c.3.s8 %v335
      %v404 = vunpack.c.0.s8 %v336
      %v405 = vunpack.c.0.s8 %v337
      %v406 = vunpack.c.0.s8 %v338
      %v407 = vunpack.c.0.s8 %v339
      %v408 = vunpack.c.1.s8 %v336
      %v409 = vunpack.c.1.s8 %v337
      %v410 = vunpack.c.1.s8 %v338
      %v411 = vunpack.c.1.s8 %v339
      %v412 = vunpack.c.2.s8 %v336
      %v413 = vunpack.c.2.s8 %v337
      %v414 = vunpack.c.2.s8 %v338
      %v415 = vunpack.c.2.s8 %v339
      %v416 = vunpack.c.3.s8 %v336
      %v417 = vunpack.c.3.s8 %v337
      %v418 = vunpack.c.3.s8 %v338
      %v419 = vunpack.c.3.s8 %v339
      %v420 = vunpack.c.0.s8 %v340
      %v421 = vunpack.c.0.s8 %v341
      %v422 = vunpack.c.0.s8 %v342
      %v423 = vunpack.c.0.s8 %v343
      %v424 = vunpack.c.1.s8 %v340
      %v425 = vunpack.c.1.s8 %v341
      %v426 = vunpack.c.1.s8 %v342
      %v427 = vunpack.c.1.s8 %v343
      %v428 = vunpack.c.2.s8 %v340
      %v429 = vunpack.c.2.s8 %v341
      %v430 = vunpack.c.2.s8 %v342
      %v431 = vunpack.c.2.s8 %v343
      %v432 = vunpack.c.3.s8 %v340
      %v433 = vunpack.c.3.s8 %v341
      %v434 = vunpack.c.3.s8 %v342
      %v435 = vunpack.c.3.s8 %v343
      %v436 = vunpack.c.0.s8 %v344
      %v437 = vunpack.c.0.s8 %v345
      %v438 = vunpack.c.0.s8 %v346
      %v439 = vunpack.c.0.s8 %v347
      %v440 = vunpack.c.1.s8 %v344
      %v441 = vunpack.c.1.s8 %v345
      %v442 = vunpack.c.1.s8 %v346
      %v443 = vunpack.c.1.s8 %v347
      %v444 = vunpack.c.2.s8 %v344
      %v445 = vunpack.c.2.s8 %v345
      %v446 = vunpack.c.2.s8 %v346
      %v447 = vunpack.c.2.s8 %v347
      %v448 = vunpack.c.3.s8 %v344
      %v449 = vunpack.c.3.s8 %v345
      %v450 = vunpack.c.3.s8 %v346
      %v451 = vunpack.c.3.s8 %v347
      %v452 = vunpack.c.0.s8 %v348
      %v453 = vunpack.c.0.s8 %v349
      %v454 = vunpack.c.0.s8 %v350
      %v455 = vunpack.c.0.s8 %v351
      %v456 = vunpack.c.1.s8 %v348
      %v457 = vunpack.c.1.s8 %v349
      %v458 = vunpack.c.1.s8 %v350
      %v459 = vunpack.c.1.s8 %v351
      %v460 = vunpack.c.2.s8 %v348
      %v461 = vunpack.c.2.s8 %v349
      %v462 = vunpack.c.2.s8 %v350
      %v463 = vunpack.c.2.s8 %v351
      %v464 = vunpack.c.3.s8 %v348
      %v465 = vunpack.c.3.s8 %v349
      %v466 = vunpack.c.3.s8 %v350
      %v467 = vunpack.c.3.s8 %v351
      %v468 = vunpack.c.0.s8 %v352
      %v469 = vunpack.c.0.s8 %v353
      %v470 = vunpack.c.0.s8 %v354
      %v471 = vunpack.c.0.s8 %v355
      %v472 = vunpack.c.1.s8 %v352
      %v473 = vunpack.c.1.s8 %v353
      %v474 = vunpack.c.1.s8 %v354
      %v475 = vunpack.c.1.s8 %v355
      %v476 = vunpack.c.2.s8 %v352
      %v477 = vunpack.c.2.s8 %v353
      %v478 = vunpack.c.2.s8 %v354
      %v479 = vunpack.c.2.s8 %v355
      %v480 = vunpack.c.3.s8 %v352
      %v481 = vunpack.c.3.s8 %v353
      %v482 = vunpack.c.3.s8 %v354
      %v483 = vunpack.c.3.s8 %v355
      %v484 = vcvt.s32.f32 %v356
      %v485 = vcvt.s32.f32 %v357
      %v486 = vcvt.s32.f32 %v358
      %v487 = vcvt.s32.f32 %v359
      %v488 = vcvt.s32.f32 %v360
      %v489 = vcvt.s32.f32 %v361
      %v490 = vcvt.s32.f32 %v362
      %v491 = vcvt.s32.f32 %v363
      %v492 = vcvt.s32.f32 %v364
      %v493 = vcvt.s32.f32 %v365
      %v494 = vcvt.s32.f32 %v366
      %v495 = vcvt.s32.f32 %v367
      %v496 = vcvt.s32.f32 %v368
      %v497 = vcvt.s32.f32 %v369
      %v498 = vcvt.s32.f32 %v370
      %v499 = vcvt.s32.f32 %v371
      %v500 = vcvt.s32.f32 %v372
      %v501 = vcvt.s32.f32 %v373
      %v502 = vcvt.s32.f32 %v374
      %v503 = vcvt.s32.f32 %v375
      %v504 = vcvt.s32.f32 %v376
      %v505 = vcvt.s32.f32 %v377
      %v506 = vcvt.s32.f32 %v378
      %v507 = vcvt.s32.f32 %v379
      %v508 = vcvt.s32.f32 %v380
      %v509 = vcvt.s32.f32 %v381
      %v510 = vcvt.s32.f32 %v382
      %v511 = vcvt.s32.f32 %v383
      %v512 = vcvt.s32.f32 %v384
      %v513 = vcvt.s32.f32 %v385
      %v514 = vcvt.s32.f32 %v386
      %v515 = vcvt.s32.f32 %v387
      %v516 = vcvt.s32.f32 %v388
      %v517 = vcvt.s32.f32 %v389
      %v518 = vcvt.s32.f32 %v390
      %v519 = vcvt.s32.f32 %v391
      %v520 = vcvt.s32.f32 %v392
      %v521 = vcvt.s32.f32 %v393
      %v522 = vcvt.s32.f32 %v394
      %v523 = vcvt.s32.f32 %v395
      %v524 = vcvt.s32.f32 %v396
      %v525 = vcvt.s32.f32 %v397
      %v526 = vcvt.s32.f32 %v398
      %v527 = vcvt.s32.f32 %v399
      %v528 = vcvt.s32.f32 %v400
      %v529 = vcvt.s32.f32 %v401
      %v530 = vcvt.s32.f32 %v402
      %v531 = vcvt.s32.f32 %v403
      %v532 = vcvt.s32.f32 %v404
      %v533 = vcvt.s32.f32 %v405
      %v534 = vcvt.s32.f32 %v406
      %v535 = vcvt.s32.f32 %v407
      %v536 = vcvt.s32.f32 %v408
      %v537 = vcvt.s32.f32 %v409
      %v538 = vcvt.s32.f32 %v410
      %v539 = vcvt.s32.f32 %v411
      %v540 = vcvt.s32.f32 %v412
      %v541 = vcvt.s32.f32 %v413
      %v542 = vcvt.s32.f32 %v414
      %v543 = vcvt.s32.f32 %v415
      %v544 = vcvt.s32.f32 %v416
      %v545 = vcvt.s32.f32 %v417
      %v546 = vcvt.s32.f32 %v418
      %v547 = vcvt.s32.f32 %v419
      %v548 = vcvt.s32.f32 %v420
      %v549 = vcvt.s32.f32 %v421
      %v550 = vcvt.s32.f32 %v422
      %v551 = vcvt.s32.f32 %v423
      %v552 = vcvt.s32.f32 %v424
      %v553 = vcvt.s32.f32 %v425
      %v554 = vcvt.s32.f32 %v426
      %v555 = vcvt.s32.f32 %v427
      %v556 = vcvt.s32.f32 %v428
      %v557 = vcvt.s32.f32 %v429
      %v558 = vcvt.s32.f32 %v430
      %v559 = vcvt.s32.f32 %v431
      %v560 = vcvt.s32.f32 %v432
      %v561 = vcvt.s32.f32 %v433
      %v562 = vcvt.s32.f32 %v434
      %v563 = vcvt.s32.f32 %v435
      %v564 = vcvt.s32.f32 %v436
      %v565 = vcvt.s32.f32 %v437
      %v566 = vcvt.s32.f32 %v438
      %v567 = vcvt.s32.f32 %v439
      %v568 = vcvt.s32.f32 %v440
      %v569 = vcvt.s32.f32 %v441
      %v570 = vcvt.s32.f32 %v442
      %v571 = vcvt.s32.f32 %v443
      %v572 = vcvt.s32.f32 %v444
      %v573 = vcvt.s32.f32 %v445
      %v574 = vcvt.s32.f32 %v446
      %v575 = vcvt.s32.f32 %v447
      %v576 = vcvt.s32.f32 %v448
      %v577 = vcvt.s32.f32 %v449
      %v578 = vcvt.s32.f32 %v450
      %v579 = vcvt.s32.f32 %v451
      %v580 = vcvt.s32.f32 %v452
      %v581 = vcvt.s32.f32 %v453
      %v582 = vcvt.s32.f32 %v454
      %v583 = vcvt.s32.f32 %v455
      %v584 = vcvt.s32.f32 %v456
      %v585 = vcvt.s32.f32 %v457
      %v586 = vcvt.s32.f32 %v458
      %v587 = vcvt.s32.f32 %v459
      %v588 = vcvt.s32.f32 %v460
      %v589 = vcvt.s32.f32 %v461
      %v590 = vcvt.s32.f32 %v462
      %v591 = vcvt.s32.f32 %v463
      %v592 = vcvt.s32.f32 %v464
      %v593 = vcvt.s32.f32 %v465
      %v594 = vcvt.s32.f32 %v466
      %v595 = vcvt.s32.f32 %v467
      %v596 = vcvt.s32.f32 %v468
      %v597 = vcvt.s32.f32 %v469
      %v598 = vcvt.s32.f32 %v470
      %v599 = vcvt.s32.f32 %v471
      %v600 = vcvt.s32.f32 %v472
      %v601 = vcvt.s32.f32 %v473
      %v602 = vcvt.s32.f32 %v474
      %v603 = vcvt.s32.f32 %v475
      %v604 = vcvt.s32.f32 %v476
      %v605 = vcvt.s32.f32 %v477
      %v606 = vcvt.s32.f32 %v478
      %v607 = vcvt.s32.f32 %v479
      %v608 = vcvt.s32.f32 %v480
      %v609 = vcvt.s32.f32 %v481
      %v610 = vcvt.s32.f32 %v482
      %v611 = vcvt.s32.f32 %v483
      %v612 = vld [vmem:[%s314] sm:$0xff]
      %v613 = vld [vmem:[%s314 + $0x8] sm:$0xff]
      %v614 = vld [vmem:[%s314 + $0x10] sm:$0xff]
      %v615 = vld [vmem:[%s314 + $0x18] sm:$0xff]
      %v616 = vld [vmem:[%s314 + $0x20] sm:$0xff]
      %v617 = vld [vmem:[%s314 + $0x28] sm:$0xff]
      %v618 = vld [vmem:[%s314 + $0x30] sm:$0xff]
      %v619 = vld [vmem:[%s314 + $0x38] sm:$0xff]
      %v620 = vld [vmem:[%s314 + $0x40] sm:$0xff]
      %v621 = vld [vmem:[%s314 + $0x48] sm:$0xff]
      %v622 = vld [vmem:[%s314 + $0x50] sm:$0xff]
      %v623 = vld [vmem:[%s314 + $0x58] sm:$0xff]
      %v624 = vld [vmem:[%s314 + $0x60] sm:$0xff]
      %v625 = vld [vmem:[%s314 + $0x68] sm:$0xff]
      %v626 = vld [vmem:[%s314 + $0x70] sm:$0xff]
      %v627 = vld [vmem:[%s314 + $0x78] sm:$0xff]
      %v628 = vld [vmem:[%s314 + $0x80] sm:$0xff]
      %v629 = vld [vmem:[%s314 + $0x88] sm:$0xff]
      %v630 = vld [vmem:[%s314 + $0x90] sm:$0xff]
      %v631 = vld [vmem:[%s314 + $0x98] sm:$0xff]
      %v632 = vld [vmem:[%s314 + $0xa0] sm:$0xff]
      %v633 = vld [vmem:[%s314 + $0xa8] sm:$0xff]
      %v634 = vld [vmem:[%s314 + $0xb0] sm:$0xff]
      %v635 = vld [vmem:[%s314 + $0xb8] sm:$0xff]
      %v636 = vld [vmem:[%s314 + $0xc0] sm:$0xff]
      %v637 = vld [vmem:[%s314 + $0xc8] sm:$0xff]
      %v638 = vld [vmem:[%s314 + $0xd0] sm:$0xff]
      %v639 = vld [vmem:[%s314 + $0xd8] sm:$0xff]
      %v640 = vld [vmem:[%s314 + $0xe0] sm:$0xff]
      %v641 = vld [vmem:[%s314 + $0xe8] sm:$0xff]
      %v642 = vld [vmem:[%s314 + $0xf0] sm:$0xff]
      %v643 = vld [vmem:[%s314 + $0xf8] sm:$0xff]
      %p644 = scmp.eq.s32.totalorder %s22, 0
      // Predicated region
      $region49: #{sage_forward.1} parent=47 // pred_check
        %p645 = pneg %p644
      $region50: #{sage_forward.1} parent=47 // pred_check_branch
        %647 = sbr.rel (%p645) target = $region52
      $region51: #{sage_forward.1} parent=47 // pred_region
        %v648 = vld [vmem:[%s2] sm:$0xff]
        %v649 = vld [vmem:[%s2 + $0x8] sm:$0xff]
        %v650 = vld [vmem:[%s2 + $0x10] sm:$0xff]
        %v651 = vld [vmem:[%s2 + $0x18] sm:$0xff]
        %v652 = vld [vmem:[%s2 + $0x20] sm:$0xff]
        %v653 = vld [vmem:[%s2 + $0x28] sm:$0xff]
        %v654 = vld [vmem:[%s2 + $0x30] sm:$0xff]
        %v655 = vld [vmem:[%s2 + $0x38] sm:$0xff]
        %v656 = vld [vmem:[%s2 + $0x40] sm:$0xff]
        %v657 = vld [vmem:[%s2 + $0x48] sm:$0xff]
        %v658 = vld [vmem:[%s2 + $0x50] sm:$0xff]
        %v659 = vld [vmem:[%s2 + $0x58] sm:$0xff]
        %v660 = vld [vmem:[%s2 + $0x60] sm:$0xff]
        %v661 = vld [vmem:[%s2 + $0x68] sm:$0xff]
        %v662 = vld [vmem:[%s2 + $0x70] sm:$0xff]
        %v663 = vld [vmem:[%s2 + $0x78] sm:$0xff]
        %v664 = vld [vmem:[%s2 + $0x80] sm:$0xff]
        %v665 = vld [vmem:[%s2 + $0x88] sm:$0xff]
        %v666 = vld [vmem:[%s2 + $0x90] sm:$0xff]
        %v667 = vld [vmem:[%s2 + $0x98] sm:$0xff]
        %v668 = vld [vmem:[%s2 + $0xa0] sm:$0xff]
        %v669 = vld [vmem:[%s2 + $0xa8] sm:$0xff]
        %v670 = vld [vmem:[%s2 + $0xb0] sm:$0xff]
        %v671 = vld [vmem:[%s2 + $0xb8] sm:$0xff]
        %v672 = vld [vmem:[%s2 + $0xc0] sm:$0xff]
        %v673 = vld [vmem:[%s2 + $0xc8] sm:$0xff]
        %v674 = vld [vmem:[%s2 + $0xd0] sm:$0xff]
        %v675 = vld [vmem:[%s2 + $0xd8] sm:$0xff]
        %v676 = vld [vmem:[%s2 + $0xe0] sm:$0xff]
        %v677 = vld [vmem:[%s2 + $0xe8] sm:$0xff]
        %v678 = vld [vmem:[%s2 + $0xf0] sm:$0xff]
        %v679 = vld [vmem:[%s2 + $0xf8] sm:$0xff]
        %v680 = vld [vmem:[%s2 + $0x100] sm:$0xff]
        %v681 = vld [vmem:[%s2 + $0x108] sm:$0xff]
        %v682 = vld [vmem:[%s2 + $0x110] sm:$0xff]
        %v683 = vld [vmem:[%s2 + $0x118] sm:$0xff]
        %v684 = vld [vmem:[%s2 + $0x120] sm:$0xff]
        %v685 = vld [vmem:[%s2 + $0x128] sm:$0xff]
        %v686 = vld [vmem:[%s2 + $0x130] sm:$0xff]
        %v687 = vld [vmem:[%s2 + $0x138] sm:$0xff]
        %v688 = vld [vmem:[%s2 + $0x140] sm:$0xff]
        %v689 = vld [vmem:[%s2 + $0x148] sm:$0xff]
        %v690 = vld [vmem:[%s2 + $0x150] sm:$0xff]
        %v691 = vld [vmem:[%s2 + $0x158] sm:$0xff]
        %v692 = vld [vmem:[%s2 + $0x160] sm:$0xff]
        %v693 = vld [vmem:[%s2 + $0x168] sm:$0xff]
        %v694 = vld [vmem:[%s2 + $0x170] sm:$0xff]
        %v695 = vld [vmem:[%s2 + $0x178] sm:$0xff]
        %v696 = vld [vmem:[%s2 + $0x180] sm:$0xff]
        %v697 = vld [vmem:[%s2 + $0x188] sm:$0xff]
        %v698 = vld [vmem:[%s2 + $0x190] sm:$0xff]
        %v699 = vld [vmem:[%s2 + $0x198] sm:$0xff]
        %v700 = vld [vmem:[%s2 + $0x1a0] sm:$0xff]
        %v701 = vld [vmem:[%s2 + $0x1a8] sm:$0xff]
        %v702 = vld [vmem:[%s2 + $0x1b0] sm:$0xff]
        %v703 = vld [vmem:[%s2 + $0x1b8] sm:$0xff]
        %v704 = vld [vmem:[%s2 + $0x1c0] sm:$0xff]
        %v705 = vld [vmem:[%s2 + $0x1c8] sm:$0xff]
        %v706 = vld [vmem:[%s2 + $0x1d0] sm:$0xff]
        %v707 = vld [vmem:[%s2 + $0x1d8] sm:$0xff]
        %v708 = vld [vmem:[%s2 + $0x1e0] sm:$0xff]
        %v709 = vld [vmem:[%s2 + $0x1e8] sm:$0xff]
        %v710 = vld [vmem:[%s2 + $0x1f0] sm:$0xff]
        %v711 = vld [vmem:[%s2 + $0x1f8] sm:$0xff]
        %712 = vmatprep.subr.mxu0 0.0
        %713 = vmatpush1.msra.mxu0 %v648
        %714 = vmatprep.subr.mxu0 0.0
        %715 = vmatpush1.msra.mxu0 %v649
        %716 = vmatprep.subr.mxu0 0.0
        %717 = vmatpush1.msra.mxu0 %v650
        %718 = vmatprep.subr.mxu0 0.0
        %719 = vmatpush1.msra.mxu0 %v651
        %720 = vmatprep.subr.mxu0 0.0
        %721 = vmatpush1.msra.mxu0 %v652
        %722 = vmatprep.subr.mxu0 0.0
        %723 = vmatpush1.msra.mxu0 %v653
        %724 = vmatprep.subr.mxu0 0.0
        %725 = vmatpush1.msra.mxu0 %v654
        %726 = vmatprep.subr.mxu0 0.0
        %727 = vmatpush1.msra.mxu0 %v655
        %728 = vmatprep.subr.mxu0 0.0
        %729 = vmatpush1.msra.mxu0 %v656
        %730 = vmatprep.subr.mxu0 0.0
        %731 = vmatpush1.msra.mxu0 %v657
        %732 = vmatprep.subr.mxu0 0.0
        %733 = vmatpush1.msra.mxu0 %v658
        %734 = vmatprep.subr.mxu0 0.0
        %735 = vmatpush1.msra.mxu0 %v659
        %736 = vmatprep.subr.mxu0 0.0
        %737 = vmatpush1.msra.mxu0 %v660
        %738 = vmatprep.subr.mxu0 0.0
        %739 = vmatpush1.msra.mxu0 %v661
        %740 = vmatprep.subr.mxu0 0.0
        %741 = vmatpush1.msra.mxu0 %v662
        %742 = vmatprep.subr.mxu0 0.0
        %743 = vmatpush1.msra.mxu0 %v663
        %744 = vmatprep.subr.mxu0 0.0
        %745 = vmatpush1.msra.mxu0 %v664
        %746 = vmatprep.subr.mxu0 0.0
        %747 = vmatpush1.msra.mxu0 %v665
        %748 = vmatprep.subr.mxu0 0.0
        %749 = vmatpush1.msra.mxu0 %v666
        %750 = vmatprep.subr.mxu0 0.0
        %751 = vmatpush1.msra.mxu0 %v667
        %752 = vmatprep.subr.mxu0 0.0
        %753 = vmatpush1.msra.mxu0 %v668
        %754 = vmatprep.subr.mxu0 0.0
        %755 = vmatpush1.msra.mxu0 %v669
        %756 = vmatprep.subr.mxu0 0.0
        %757 = vmatpush1.msra.mxu0 %v670
        %758 = vmatprep.subr.mxu0 0.0
        %759 = vmatpush1.msra.mxu0 %v671
        %760 = vmatprep.subr.mxu0 0.0
        %761 = vmatpush1.msra.mxu0 %v672
        %762 = vmatprep.subr.mxu0 0.0
        %763 = vmatpush1.msra.mxu0 %v673
        %764 = vmatprep.subr.mxu0 0.0
        %765 = vmatpush1.msra.mxu0 %v674
        %766 = vmatprep.subr.mxu0 0.0
        %767 = vmatpush1.msra.mxu0 %v675
        %768 = vmatprep.subr.mxu0 0.0
        %769 = vmatpush1.msra.mxu0 %v676
        %770 = vmatprep.subr.mxu0 0.0
        %771 = vmatpush1.msra.mxu0 %v677
        %772 = vmatprep.subr.mxu0 0.0
        %773 = vmatpush1.msra.mxu0 %v678
        %774 = vmatprep.subr.mxu0 0.0
        %775 = vmatpush1.msra.mxu0 %v679
        %776 = vmatprep.mubr.f32.mxu0 %v485
        %777 = vmatmul.mubr.f32.gmra.mrb[0].mxu0 %v484
        %v778 = vpop.f32.mrb[0].mxu0
        %v779 = vadd.f32 0.0, %v778
        %v780 = vpop.f32.mrb[0].mxu0
        %781 = vmatprep.mubr.f32.mxu0 %v489
        %782 = vmatmul.mubr.f32.gmra.mrb[0].mxu0 %v488
        %v783 = vpop.f32.mrb[0].mxu0
        %v784 = vadd.f32 0.0, %v783
        %v785 = vpop.f32.mrb[0].mxu0
        %786 = vmatprep.mubr.f32.mxu0 %v493
        %787 = vmatmul.mubr.f32.gmra.mrb[0].mxu0 %v492
        %v788 = vpop.f32.mrb[0].mxu0
        %v789 = vadd.f32 0.0, %v788
        %v790 = vpop.f32.mrb[0].mxu0
        %791 = vmatprep.mubr.f32.mxu0 %v497
        %792 = vmatmul.mubr.f32.gmra.mrb[0].mxu0 %v496
        %v793 = vpop.f32.mrb[0].mxu0
        %v794 = vadd.f32 0.0, %v793
        %v795 = vpop.f32.mrb[0].mxu0
        %796 = vmatprep.mubr.f32.mxu0 %v501
        %797 = vmatmul.mubr.f32.gmra.mrb[0].mxu0 %v500
        %v798 = vpop.f32.mrb[0].mxu0
        %v799 = vadd.f32 0.0, %v798
        %v800 = vpop.f32.mrb[0].mxu0
        %801 = vmatprep.mubr.f32.mxu0 %v505
        %802 = vmatmul.mubr.f32.gmra.mrb[0].mxu0 %v504
        %v803 = vpop.f32.mrb[0].mxu0
        %v804 = vadd.f32 0.0, %v803
        %v805 = vpop.f32.mrb[0].mxu0
        %806 = vmatprep.mubr.f32.mxu0 %v509
        %807 = vmatmul.mubr.f32.gmra.mrb[0].mxu0 %v508
        %v808 = vpop.f32.mrb[0].mxu0
        %v809 = vadd.f32 0.0, %v808
        %v810 = vpop.f32.mrb[0].mxu0
        %811 = vmatprep.mubr.f32.mxu0 %v513
        %812 = vmatmul.mubr.f32.gmra.mrb[0].mxu0 %v512
        %v813 = vpop.f32.mrb[0].mxu0
        %v814 = vadd.f32 0.0, %v813
        %v815 = vpop.f32.mrb[0].mxu0
        %816 = vmatprep.mubr.f32.mxu0 %v517
        %817 = vmatmul.mubr.f32.gmra.mrb[0].mxu0 %v516
        %v818 = vpop.f32.mrb[0].mxu0
        %v819 = vadd.f32 0.0, %v818
        %v820 = vpop.f32.mrb[0].mxu0
        %821 = vmatprep.mubr.f32.mxu0 %v521
        %822 = vmatmul.mubr.f32.gmra.mrb[0].mxu0 %v520
        %v823 = vpop.f32.mrb[0].mxu0
        %v824 = vadd.f32 0.0, %v823
        %v825 = vpop.f32.mrb[0].mxu0
        %826 = vmatprep.mubr.f32.mxu0 %v525
        %827 = vmatmul.mubr.f32.gmra.mrb[0].mxu0 %v524
        %v828 = vpop.f32.mrb[0].mxu0
        %v829 = vadd.f32 0.0, %v828
        %v830 = vpop.f32.mrb[0].mxu0
        %831 = vmatprep.mubr.f32.mxu0 %v529
        %832 = vmatmul.mubr.f32.gmra.mrb[0].mxu0 %v528
        %v833 = vpop.f32.mrb[0].mxu0
        %v834 = vadd.f32 0.0, %v833
        %v835 = vpop.f32.mrb[0].mxu0
        %836 = vmatprep.mubr.f32.mxu0 %v533
        %837 = vmatmul.mubr.f32.gmra.mrb[0].mxu0 %v532
        %v838 = vpop.f32.mrb[0].mxu0
        %v839 = vadd.f32 0.0, %v838
        %v840 = vpop.f32.mrb[0].mxu0
        %841 = vmatprep.mubr.f32.mxu0 %v537
        %842 = vmatmul.mubr.f32.gmra.mrb[0].mxu0 %v536
        %v843 = vpop.f32.mrb[0].mxu0
        %v844 = vadd.f32 0.0, %v843
        %v845 = vpop.f32.mrb[0].mxu0
        %846 = vmatprep.mubr.f32.mxu0 %v541
        %847 = vmatmul.mubr.f32.gmra.mrb[0].mxu0 %v540
        %v848 = vpop.f32.mrb[0].mxu0
        %v849 = vadd.f32 0.0, %v848
        %v850 = vpop.f32.mrb[0].mxu0
        %851 = vmatprep.mubr.f32.mxu0 %v545
        %852 = vmatmul.mubr.f32.gmra.mrb[0].mxu0 %v544
        %v853 = vpop.f32.mrb[0].mxu0
        %v854 = vadd.f32 0.0, %v853
        %v855 = vpop.f32.mrb[0].mxu0
        %856 = vmatprep.mubr.f32.mxu0 %v549
        %857 = vmatmul.mubr.f32.gmra.mrb[0].mxu0 %v548
        %v858 = vpop.f32.mrb[0].mxu0
        %v859 = vadd.f32 0.0, %v858
        %v860 = vpop.f32.mrb[0].mxu0
        %861 = vmatprep.mubr.f32.mxu0 %v553
        %862 = vmatmul.mubr.f32.gmra.mrb[0].mxu0 %v552
        %v863 = vpop.f32.mrb[0].mxu0
        %v864 = vadd.f32 0.0, %v863
        %v865 = vpop.f32.mrb[0].mxu0
        %866 = vmatprep.mubr.f32.mxu0 %v557
        %867 = vmatmul.mubr.f32.gmra.mrb[0].mxu0 %v556
        %v868 = vpop.f32.mrb[0].mxu0
        %v869 = vadd.f32 0.0, %v868
        %v870 = vpop.f32.mrb[0].mxu0
        %871 = vmatprep.mubr.f32.mxu0 %v561
        %872 = vmatmul.mubr.f32.gmra.mrb[0].mxu0 %v560
        %v873 = vpop.f32.mrb[0].mxu0
        %v874 = vadd.f32 0.0, %v873
        %v875 = vpop.f32.mrb[0].mxu0
        %876 = vmatprep.mubr.f32.mxu0 %v565
        %877 = vmatmul.mubr.f32.gmra.mrb[0].mxu0 %v564
        %v878 = vpop.f32.mrb[0].mxu0
        %v879 = vadd.f32 0.0, %v878
        %v880 = vpop.f32.mrb[0].mxu0
        %881 = vmatprep.mubr.f32.mxu0 %v569
        %882 = vmatmul.mubr.f32.gmra.mrb[0].mxu0 %v568
        %v883 = vpop.f32.mrb[0].mxu0
        %v884 = vadd.f32 0.0, %v883
        %v885 = vpop.f32.mrb[0].mxu0
        %886 = vmatprep.mubr.f32.mxu0 %v573
        %887 = vmatmul.mubr.f32.gmra.mrb[0].mxu0 %v572
        %v888 = vpop.f32.mrb[0].mxu0
        %v889 = vadd.f32 0.0, %v888
        %v890 = vpop.f32.mrb[0].mxu0
        %891 = vmatprep.mubr.f32.mxu0 %v577
        %892 = vmatmul.mubr.f32.gmra.mrb[0].mxu0 %v576
        %v893 = vpop.f32.mrb[0].mxu0
        %v894 = vadd.f32 0.0, %v893
        %v895 = vpop.f32.mrb[0].mxu0
        %896 = vmatprep.mubr.f32.mxu0 %v581
        %897 = vmatmul.mubr.f32.gmra.mrb[0].mxu0 %v580
        %v898 = vpop.f32.mrb[0].mxu0
        %v899 = vadd.f32 0.0, %v898
        %v900 = vpop.f32.mrb[0].mxu0
        %901 = vmatprep.mubr.f32.mxu0 %v585
        %902 = vmatmul.mubr.f32.gmra.mrb[0].mxu0 %v584
        %v903 = vpop.f32.mrb[0].mxu0
        %v904 = vadd.f32 0.0, %v903
        %v905 = vpop.f32.mrb[0].mxu0
        %906 = vmatprep.mubr.f32.mxu0 %v589
        %907 = vmatmul.mubr.f32.gmra.mrb[0].mxu0 %v588
        %v908 = vpop.f32.mrb[0].mxu0
        %v909 = vadd.f32 0.0, %v908
        %v910 = vpop.f32.mrb[0].mxu0
        %911 = vmatprep.mubr.f32.mxu0 %v593
        %912 = vmatmul.mubr.f32.gmra.mrb[0].mxu0 %v592
        %v913 = vpop.f32.mrb[0].mxu0
        %v914 = vadd.f32 0.0, %v913
        %v915 = vpop.f32.mrb[0].mxu0
        %916 = vmatprep.mubr.f32.mxu0 %v597
        %917 = vmatmul.mubr.f32.gmra.mrb[0].mxu0 %v596
        %v918 = vpop.f32.mrb[0].mxu0
        %v919 = vadd.f32 0.0, %v918
        %v920 = vpop.f32.mrb[0].mxu0
        %921 = vmatprep.mubr.f32.mxu0 %v601
        %922 = vmatmul.mubr.f32.gmra.mrb[0].mxu0 %v600
        %v923 = vpop.f32.mrb[0].mxu0
        %v924 = vadd.f32 0.0, %v923
        %v925 = vpop.f32.mrb[0].mxu0
        %926 = vmatprep.mubr.f32.mxu0 %v605
        %927 = vmatmul.mubr.f32.gmra.mrb[0].mxu0 %v604
        %v928 = vpop.f32.mrb[0].mxu0
        %v929 = vadd.f32 0.0, %v928
        %v930 = vpop.f32.mrb[0].mxu0
        %931 = vmatprep.mubr.f32.mxu0 %v609
        %932 = vmatmul.mubr.f32.gmra.mrb[0].mxu0 %v608
        %v933 = vpop.f32.mrb[0].mxu0
        %v934 = vadd.f32 0.0, %v933
        %v935 = vpop.f32.mrb[0].mxu0
        %936 = vdwg.mxu0
        %937 = vmatprep.subr.mxu0 0.0
        %938 = vmatpush1.msra.mxu0 %v680
        %939 = vmatprep.subr.mxu0 0.0
        %940 = vmatpush1.msra.mxu0 %v681
        %941 = vmatprep.subr.mxu0 0.0
        %942 = vmatpush1.msra.mxu0 %v682
        %943 = vmatprep.subr.mxu0 0.0
        %944 = vmatpush1.msra.mxu0 %v683
        %945 = vmatprep.subr.mxu0 0.0
        %946 = vmatpush1.msra.mxu0 %v684
        %947 = vmatprep.subr.mxu0 0.0
        %948 = vmatpush1.msra.mxu0 %v685
        %949 = vmatprep.subr.mxu0 0.0
        %950 = vmatpush1.msra.mxu0 %v686
        %951 = vmatprep.subr.mxu0 0.0
        %952 = vmatpush1.msra.mxu0 %v687
        %953 = vmatprep.subr.mxu0 0.0
        %954 = vmatpush1.msra.mxu0 %v688
        %955 = vmatprep.subr.mxu0 0.0
        %956 = vmatpush1.msra.mxu0 %v689
        %957 = vmatprep.subr.mxu0 0.0
        %958 = vmatpush1.msra.mxu0 %v690
        %959 = vmatprep.subr.mxu0 0.0
        %960 = vmatpush1.msra.mxu0 %v691
        %961 = vmatprep.subr.mxu0 0.0
        %962 = vmatpush1.msra.mxu0 %v692
        %963 = vmatprep.subr.mxu0 0.0
        %964 = vmatpush1.msra.mxu0 %v693
        %965 = vmatprep.subr.mxu0 0.0
        %966 = vmatpush1.msra.mxu0 %v694
        %967 = vmatprep.subr.mxu0 0.0
        %968 = vmatpush1.msra.mxu0 %v695
        %969 = vmatprep.subr.mxu0 0.0
        %970 = vmatpush1.msra.mxu0 %v696
        %971 = vmatprep.subr.mxu0 0.0
        %972 = vmatpush1.msra.mxu0 %v697
        %973 = vmatprep.subr.mxu0 0.0
        %974 = vmatpush1.msra.mxu0 %v698
        %975 = vmatprep.subr.mxu0 0.0
        %976 = vmatpush1.msra.mxu0 %v699
        %977 = vmatprep.subr.mxu0 0.0
        %978 = vmatpush1.msra.mxu0 %v700
        %979 = vmatprep.subr.mxu0 0.0
        %980 = vmatpush1.msra.mxu0 %v701
        %981 = vmatprep.subr.mxu0 0.0
        %982 = vmatpush1.msra.mxu0 %v702
        %983 = vmatprep.subr.mxu0 0.0
        %984 = vmatpush1.msra.mxu0 %v703
        %985 = vmatprep.subr.mxu0 0.0
        %986 = vmatpush1.msra.mxu0 %v704
        %987 = vmatprep.subr.mxu0 0.0
        %988 = vmatpush1.msra.mxu0 %v705
        %989 = vmatprep.subr.mxu0 0.0
        %990 = vmatpush1.msra.mxu0 %v706
        %991 = vmatprep.subr.mxu0 0.0
        %992 = vmatpush1.msra.mxu0 %v707
        %993 = vmatprep.subr.mxu0 0.0
        %994 = vmatpush1.msra.mxu0 %v708
        %995 = vmatprep.subr.mxu0 0.0
        %996 = vmatpush1.msra.mxu0 %v709
        %997 = vmatprep.subr.mxu0 0.0
        %998 = vmatpush1.msra.mxu0 %v710
        %999 = vmatprep.subr.mxu0 0.0
        %1000 = vmatpush1.msra.mxu0 %v711
        %1001 = vmatprep.mubr.f32.mxu0 %v487
        %1002 = vmatmul.mubr.f32.gmra.mrb[0].mxu0 %v486
        %v1003 = vpop.f32.mrb[0].mxu0
        %v1004 = vadd.f32 %v779, %v1003
        %v1005 = vpop.f32.mrb[0].mxu0
        %1006 = vmatprep.mubr.f32.mxu0 %v491
        %1007 = vmatmul.mubr.f32.gmra.mrb[0].mxu0 %v490
        %v1008 = vpop.f32.mrb[0].mxu0
        %v1009 = vadd.f32 %v784, %v1008
        %v1010 = vpop.f32.mrb[0].mxu0
        %1011 = vmatprep.mubr.f32.mxu0 %v495
        %1012 = vmatmul.mubr.f32.gmra.mrb[0].mxu0 %v494
        %v1013 = vpop.f32.mrb[0].mxu0
        %v1014 = vadd.f32 %v789, %v1013
        %v1015 = vpop.f32.mrb[0].mxu0
        %1016 = vmatprep.mubr.f32.mxu0 %v499
        %1017 = vmatmul.mubr.f32.gmra.mrb[0].mxu0 %v498
        %v1018 = vpop.f32.mrb[0].mxu0
        %v1019 = vadd.f32 %v794, %v1018
        %v1020 = vpop.f32.mrb[0].mxu0
        %1021 = vmatprep.mubr.f32.mxu0 %v503
        %1022 = vmatmul.mubr.f32.gmra.mrb[0].mxu0 %v502
        %v1023 = vpop.f32.mrb[0].mxu0
        %v1024 = vadd.f32 %v799, %v1023
        %v1025 = vpop.f32.mrb[0].mxu0
        %1026 = vmatprep.mubr.f32.mxu0 %v507
        %1027 = vmatmul.mubr.f32.gmra.mrb[0].mxu0 %v506
        %v1028 = vpop.f32.mrb[0].mxu0
        %v1029 = vadd.f32 %v804, %v1028
        %v1030 = vpop.f32.mrb[0].mxu0
        %1031 = vmatprep.mubr.f32.mxu0 %v511
        %1032 = vmatmul.mubr.f32.gmra.mrb[0].mxu0 %v510
        %v1033 = vpop.f32.mrb[0].mxu0
        %v1034 = vadd.f32 %v809, %v1033
        %v1035 = vpop.f32.mrb[0].mxu0
        %1036 = vmatprep.mubr.f32.mxu0 %v515
        %1037 = vmatmul.mubr.f32.gmra.mrb[0].mxu0 %v514
        %v1038 = vpop.f32.mrb[0].mxu0
        %v1039 = vadd.f32 %v814, %v1038
        %v1040 = vpop.f32.mrb[0].mxu0
        %1041 = vmatprep.mubr.f32.mxu0 %v519
        %1042 = vmatmul.mubr.f32.gmra.mrb[0].mxu0 %v518
        %v1043 = vpop.f32.mrb[0].mxu0
        %v1044 = vadd.f32 %v819, %v1043
        %v1045 = vpop.f32.mrb[0].mxu0
        %1046 = vmatprep.mubr.f32.mxu0 %v523
        %1047 = vmatmul.mubr.f32.gmra.mrb[0].mxu0 %v522
        %v1048 = vpop.f32.mrb[0].mxu0
        %v1049 = vadd.f32 %v824, %v1048
        %v1050 = vpop.f32.mrb[0].mxu0
        %1051 = vmatprep.mubr.f32.mxu0 %v527
        %1052 = vmatmul.mubr.f32.gmra.mrb[0].mxu0 %v526
        %v1053 = vpop.f32.mrb[0].mxu0
        %v1054 = vadd.f32 %v829, %v1053
        %v1055 = vpop.f32.mrb[0].mxu0
        %1056 = vmatprep.mubr.f32.mxu0 %v531
        %1057 = vmatmul.mubr.f32.gmra.mrb[0].mxu0 %v530
        %v1058 = vpop.f32.mrb[0].mxu0
        %v1059 = vadd.f32 %v834, %v1058
        %v1060 = vpop.f32.mrb[0].mxu0
        %1061 = vmatprep.mubr.f32.mxu0 %v535
        %1062 = vmatmul.mubr.f32.gmra.mrb[0].mxu0 %v534
        %v1063 = vpop.f32.mrb[0].mxu0
        %v1064 = vadd.f32 %v839, %v1063
        %v1065 = vpop.f32.mrb[0].mxu0
        %1066 = vmatprep.mubr.f32.mxu0 %v539
        %1067 = vmatmul.mubr.f32.gmra.mrb[0].mxu0 %v538
        %v1068 = vpop.f32.mrb[0].mxu0
        %v1069 = vadd.f32 %v844, %v1068
        %v1070 = vpop.f32.mrb[0].mxu0
        %1071 = vmatprep.mubr.f32.mxu0 %v543
        %1072 = vmatmul.mubr.f32.gmra.mrb[0].mxu0 %v542
        %v1073 = vpop.f32.mrb[0].mxu0
        %v1074 = vadd.f32 %v849, %v1073
        %v1075 = vpop.f32.mrb[0].mxu0
        %1076 = vmatprep.mubr.f32.mxu0 %v547
        %1077 = vmatmul.mubr.f32.gmra.mrb[0].mxu0 %v546
        %v1078 = vpop.f32.mrb[0].mxu0
        %v1079 = vadd.f32 %v854, %v1078
        %v1080 = vpop.f32.mrb[0].mxu0
        %1081 = vmatprep.mubr.f32.mxu0 %v551
        %1082 = vmatmul.mubr.f32.gmra.mrb[0].mxu0 %v550
        %v1083 = vpop.f32.mrb[0].mxu0
        %v1084 = vadd.f32 %v859, %v1083
        %v1085 = vpop.f32.mrb[0].mxu0
        %1086 = vmatprep.mubr.f32.mxu0 %v555
        %1087 = vmatmul.mubr.f32.gmra.mrb[0].mxu0 %v554
        %v1088 = vpop.f32.mrb[0].mxu0
        %v1089 = vadd.f32 %v864, %v1088
        %v1090 = vpop.f32.mrb[0].mxu0
        %1091 = vmatprep.mubr.f32.mxu0 %v559
        %1092 = vmatmul.mubr.f32.gmra.mrb[0].mxu0 %v558
        %v1093 = vpop.f32.mrb[0].mxu0
        %v1094 = vadd.f32 %v869, %v1093
        %v1095 = vpop.f32.mrb[0].mxu0
        %1096 = vmatprep.mubr.f32.mxu0 %v563
        %1097 = vmatmul.mubr.f32.gmra.mrb[0].mxu0 %v562
        %v1098 = vpop.f32.mrb[0].mxu0
        %v1099 = vadd.f32 %v874, %v1098
        %v1100 = vpop.f32.mrb[0].mxu0
        %1101 = vmatprep.mubr.f32.mxu0 %v567
        %1102 = vmatmul.mubr.f32.gmra.mrb[0].mxu0 %v566
        %v1103 = vpop.f32.mrb[0].mxu0
        %v1104 = vadd.f32 %v879, %v1103
        %v1105 = vpop.f32.mrb[0].mxu0
        %1106 = vmatprep.mubr.f32.mxu0 %v571
        %1107 = vmatmul.mubr.f32.gmra.mrb[0].mxu0 %v570
        %v1108 = vpop.f32.mrb[0].mxu0
        %v1109 = vadd.f32 %v884, %v1108
        %v1110 = vpop.f32.mrb[0].mxu0
        %1111 = vmatprep.mubr.f32.mxu0 %v575
        %1112 = vmatmul.mubr.f32.gmra.mrb[0].mxu0 %v574
        %v1113 = vpop.f32.mrb[0].mxu0
        %v1114 = vadd.f32 %v889, %v1113
        %v1115 = vpop.f32.mrb[0].mxu0
        %1116 = vmatprep.mubr.f32.mxu0 %v579
        %1117 = vmatmul.mubr.f32.gmra.mrb[0].mxu0 %v578
        %v1118 = vpop.f32.mrb[0].mxu0
        %v1119 = vadd.f32 %v894, %v1118
        %v1120 = vpop.f32.mrb[0].mxu0
        %1121 = vmatprep.mubr.f32.mxu0 %v583
        %1122 = vmatmul.mubr.f32.gmra.mrb[0].mxu0 %v582
        %v1123 = vpop.f32.mrb[0].mxu0
        %v1124 = vadd.f32 %v899, %v1123
        %v1125 = vpop.f32.mrb[0].mxu0
        %1126 = vmatprep.mubr.f32.mxu0 %v587
        %1127 = vmatmul.mubr.f32.gmra.mrb[0].mxu0 %v586
        %v1128 = vpop.f32.mrb[0].mxu0
        %v1129 = vadd.f32 %v904, %v1128
        %v1130 = vpop.f32.mrb[0].mxu0
        %1131 = vmatprep.mubr.f32.mxu0 %v591
        %1132 = vmatmul.mubr.f32.gmra.mrb[0].mxu0 %v590
        %v1133 = vpop.f32.mrb[0].mxu0
        %v1134 = vadd.f32 %v909, %v1133
        %v1135 = vpop.f32.mrb[0].mxu0
        %1136 = vmatprep.mubr.f32.mxu0 %v595
        %1137 = vmatmul.mubr.f32.gmra.mrb[0].mxu0 %v594
        %v1138 = vpop.f32.mrb[0].mxu0
        %v1139 = vadd.f32 %v914, %v1138
        %v1140 = vpop.f32.mrb[0].mxu0
        %1141 = vmatprep.mubr.f32.mxu0 %v599
        %1142 = vmatmul.mubr.f32.gmra.mrb[0].mxu0 %v598
        %v1143 = vpop.f32.mrb[0].mxu0
        %v1144 = vadd.f32 %v919, %v1143
        %v1145 = vpop.f32.mrb[0].mxu0
        %1146 = vmatprep.mubr.f32.mxu0 %v603
        %1147 = vmatmul.mubr.f32.gmra.mrb[0].mxu0 %v602
        %v1148 = vpop.f32.mrb[0].mxu0
        %v1149 = vadd.f32 %v924, %v1148
        %v1150 = vpop.f32.mrb[0].mxu0
        %1151 = vmatprep.mubr.f32.mxu0 %v607
        %1152 = vmatmul.mubr.f32.gmra.mrb[0].mxu0 %v606
        %v1153 = vpop.f32.mrb[0].mxu0
        %v1154 = vadd.f32 %v929, %v1153
        %v1155 = vpop.f32.mrb[0].mxu0
        %1156 = vmatprep.mubr.f32.mxu0 %v611
        %1157 = vmatmul.mubr.f32.gmra.mrb[0].mxu0 %v610
        %v1158 = vpop.f32.mrb[0].mxu0
        %v1159 = vadd.f32 %v934, %v1158
        %v1160 = vpop.f32.mrb[0].mxu0
        %1161 = vdwg.mxu0
        %1163 = vset.pattern.permute.xlu0 0
        %1164 = vperm.xlu0 %1163, %v612
        %v1165 = vpop.permute.xlu0 %1164
        %1168 = vset.pattern.permute.xlu0 0
        %1169 = vperm.xlu0 %1168, %v613
        %v1170 = vpop.permute.xlu0 %1169
        %1173 = vset.pattern.permute.xlu0 0
        %1174 = vperm.xlu0 %1173, %v614
        %v1175 = vpop.permute.xlu0 %1174
        %1178 = vset.pattern.permute.xlu0 0
        %1179 = vperm.xlu0 %1178, %v615
        %v1180 = vpop.permute.xlu0 %1179
        %1183 = vset.pattern.permute.xlu0 0
        %1184 = vperm.xlu0 %1183, %v616
        %v1185 = vpop.permute.xlu0 %1184
        %1188 = vset.pattern.permute.xlu0 0
        %1189 = vperm.xlu0 %1188, %v617
        %v1190 = vpop.permute.xlu0 %1189
        %1193 = vset.pattern.permute.xlu0 0
        %1194 = vperm.xlu0 %1193, %v618
        %v1195 = vpop.permute.xlu0 %1194
        %1198 = vset.pattern.permute.xlu0 0
        %1199 = vperm.xlu0 %1198, %v619
        %v1200 = vpop.permute.xlu0 %1199
        %1203 = vset.pattern.permute.xlu0 0
        %1204 = vperm.xlu0 %1203, %v620
        %v1205 = vpop.permute.xlu0 %1204
        %1208 = vset.pattern.permute.xlu0 0
        %1209 = vperm.xlu0 %1208, %v621
        %v1210 = vpop.permute.xlu0 %1209
        %1213 = vset.pattern.permute.xlu0 0
        %1214 = vperm.xlu0 %1213, %v622
        %v1215 = vpop.permute.xlu0 %1214
        %1218 = vset.pattern.permute.xlu0 0
        %1219 = vperm.xlu0 %1218, %v623
        %v1220 = vpop.permute.xlu0 %1219
        %1223 = vset.pattern.permute.xlu0 0
        %1224 = vperm.xlu0 %1223, %v624
        %v1225 = vpop.permute.xlu0 %1224
        %1228 = vset.pattern.permute.xlu0 0
        %1229 = vperm.xlu0 %1228, %v625
        %v1230 = vpop.permute.xlu0 %1229
        %1233 = vset.pattern.permute.xlu0 0
        %1234 = vperm.xlu0 %1233, %v626
        %v1235 = vpop.permute.xlu0 %1234
        %1238 = vset.pattern.permute.xlu0 0
        %1239 = vperm.xlu0 %1238, %v627
        %v1240 = vpop.permute.xlu0 %1239
        %1243 = vset.pattern.permute.xlu0 0
        %1244 = vperm.xlu0 %1243, %v628
        %v1245 = vpop.permute.xlu0 %1244
        %1248 = vset.pattern.permute.xlu0 0
        %1249 = vperm.xlu0 %1248, %v629
        %v1250 = vpop.permute.xlu0 %1249
        %1253 = vset.pattern.permute.xlu0 0
        %1254 = vperm.xlu0 %1253, %v630
        %v1255 = vpop.permute.xlu0 %1254
        %1258 = vset.pattern.permute.xlu0 0
        %1259 = vperm.xlu0 %1258, %v631
        %v1260 = vpop.permute.xlu0 %1259
        %1263 = vset.pattern.permute.xlu0 0
        %1264 = vperm.xlu0 %1263, %v632
        %v1265 = vpop.permute.xlu0 %1264
        %1268 = vset.pattern.permute.xlu0 0
        %1269 = vperm.xlu0 %1268, %v633
        %v1270 = vpop.permute.xlu0 %1269
        %1273 = vset.pattern.permute.xlu0 0
        %1274 = vperm.xlu0 %1273, %v634
        %v1275 = vpop.permute.xlu0 %1274
        %1278 = vset.pattern.permute.xlu0 0
        %1279 = vperm.xlu0 %1278, %v635
        %v1280 = vpop.permute.xlu0 %1279
        %1283 = vset.pattern.permute.xlu0 0
        %1284 = vperm.xlu0 %1283, %v636
        %v1285 = vpop.permute.xlu0 %1284
        %1288 = vset.pattern.permute.xlu0 0
        %1289 = vperm.xlu0 %1288, %v637
        %v1290 = vpop.permute.xlu0 %1289
        %1293 = vset.pattern.permute.xlu0 0
        %1294 = vperm.xlu0 %1293, %v638
        %v1295 = vpop.permute.xlu0 %1294
        %1298 = vset.pattern.permute.xlu0 0
        %1299 = vperm.xlu0 %1298, %v639
        %v1300 = vpop.permute.xlu0 %1299
        %1303 = vset.pattern.permute.xlu0 0
        %1304 = vperm.xlu0 %1303, %v640
        %v1305 = vpop.permute.xlu0 %1304
        %1308 = vset.pattern.permute.xlu0 0
        %1309 = vperm.xlu0 %1308, %v641
        %v1310 = vpop.permute.xlu0 %1309
        %1313 = vset.pattern.permute.xlu0 0
        %1314 = vperm.xlu0 %1313, %v642
        %v1315 = vpop.permute.xlu0 %1314
        %1318 = vset.pattern.permute.xlu0 0
        %1319 = vperm.xlu0 %1318, %v643
        %v1320 = vpop.permute.xlu0 %1319
        %v1322 = vmul.f32 %v1165, %v1004
        %v1323 = vmul.f32 %v1170, %v1009
        %v1324 = vmul.f32 %v1175, %v1014
        %v1325 = vmul.f32 %v1180, %v1019
        %v1326 = vmul.f32 %v1185, %v1024
        %v1327 = vmul.f32 %v1190, %v1029
        %v1328 = vmul.f32 %v1195, %v1034
        %v1329 = vmul.f32 %v1200, %v1039
        %v1330 = vmul.f32 %v1205, %v1044
        %v1331 = vmul.f32 %v1210, %v1049
        %v1332 = vmul.f32 %v1215, %v1054
        %v1333 = vmul.f32 %v1220, %v1059
        %v1334 = vmul.f32 %v1225, %v1064
        %v1335 = vmul.f32 %v1230, %v1069
        %v1336 = vmul.f32 %v1235, %v1074
        %v1337 = vmul.f32 %v1240, %v1079
        %v1338 = vmul.f32 %v1245, %v1084
        %v1339 = vmul.f32 %v1250, %v1089
        %v1340 = vmul.f32 %v1255, %v1094
        %v1341 = vmul.f32 %v1260, %v1099
        %v1342 = vmul.f32 %v1265, %v1104
        %v1343 = vmul.f32 %v1270, %v1109
        %v1344 = vmul.f32 %v1275, %v1114
        %v1345 = vmul.f32 %v1280, %v1119
        %v1346 = vmul.f32 %v1285, %v1124
        %v1347 = vmul.f32 %v1290, %v1129
        %v1348 = vmul.f32 %v1295, %v1134
        %v1349 = vmul.f32 %v1300, %v1139
        %v1350 = vmul.f32 %v1305, %v1144
        %v1351 = vmul.f32 %v1310, %v1149
        %v1352 = vmul.f32 %v1315, %v1154
        %v1353 = vmul.f32 %v1320, %v1159
        %v1354 = vld [vmem:[%s3] sm:$0xff]
        %v1355 = vld [vmem:[%s3 + $0x8] sm:$0xff]
        %v1356 = vld [vmem:[%s3 + $0x10] sm:$0xff]
        %v1357 = vld [vmem:[%s3 + $0x18] sm:$0xff]
        %v1358 = vld [vmem:[%s3 + $0x20] sm:$0xff]
        %v1359 = vld [vmem:[%s3 + $0x28] sm:$0xff]
        %v1360 = vld [vmem:[%s3 + $0x30] sm:$0xff]
        %v1361 = vld [vmem:[%s3 + $0x38] sm:$0xff]
        %v1362 = vld [vmem:[%s3 + $0x40] sm:$0xff]
        %v1363 = vld [vmem:[%s3 + $0x48] sm:$0xff]
        %v1364 = vld [vmem:[%s3 + $0x50] sm:$0xff]
        %v1365 = vld [vmem:[%s3 + $0x58] sm:$0xff]
        %v1366 = vld [vmem:[%s3 + $0x60] sm:$0xff]
        %v1367 = vld [vmem:[%s3 + $0x68] sm:$0xff]
        %v1368 = vld [vmem:[%s3 + $0x70] sm:$0xff]
        %v1369 = vld [vmem:[%s3 + $0x78] sm:$0xff]
        %v1370 = vld [vmem:[%s4] sm:$0x1]
        %v1372 = vlaneseq
        %v1373 = vshrl.u32 %v1372, 7
        %v1374 = vsub.s32 0, %v1373
        %v1375 = vrot.slane %v1370, %v1374
        %1377 = vmatprep.subr.mxu0 0.0
        %1378 = vmatpush1.msra.mxu0 %v1354
        %1379 = vmatprep.subr.mxu0 0.0
        %1380 = vmatpush1.msra.mxu0 %v1355
        %1381 = vmatprep.subr.mxu0 0.0
        %1382 = vmatpush1.msra.mxu0 %v1356
        %1383 = vmatprep.subr.mxu0 0.0
        %1384 = vmatpush1.msra.mxu0 %v1357
        %1385 = vmatprep.subr.mxu0 0.0
        %1386 = vmatpush1.msra.mxu0 %v1358
        %1387 = vmatprep.subr.mxu0 0.0
        %1388 = vmatpush1.msra.mxu0 %v1359
        %1389 = vmatprep.subr.mxu0 0.0
        %1390 = vmatpush1.msra.mxu0 %v1360
        %1391 = vmatprep.subr.mxu0 0.0
        %1392 = vmatpush1.msra.mxu0 %v1361
        %1393 = vmatprep.subr.mxu0 0.0
        %1394 = vmatpush1.msra.mxu0 %v1362
        %1395 = vmatprep.subr.mxu0 0.0
        %1396 = vmatpush1.msra.mxu0 %v1363
        %1397 = vmatprep.subr.mxu0 0.0
        %1398 = vmatpush1.msra.mxu0 %v1364
        %1399 = vmatprep.subr.mxu0 0.0
        %1400 = vmatpush1.msra.mxu0 %v1365
        %1401 = vmatprep.subr.mxu0 0.0
        %1402 = vmatpush1.msra.mxu0 %v1366
        %1403 = vmatprep.subr.mxu0 0.0
        %1404 = vmatpush1.msra.mxu0 %v1367
        %1405 = vmatprep.subr.mxu0 0.0
        %1406 = vmatpush1.msra.mxu0 %v1368
        %1407 = vmatprep.subr.mxu0 0.0
        %1408 = vmatpush1.msra.mxu0 %v1369
        %1409 = vmatprep.subr.mxu0 0.0
        %1410 = vmatpush1.msra.mxu0 0.0
        %1411 = vmatprep.subr.mxu0 0.0
        %1412 = vmatpush1.msra.mxu0 0.0
        %1413 = vmatprep.subr.mxu0 0.0
        %1414 = vmatpush1.msra.mxu0 0.0
        %1415 = vmatprep.subr.mxu0 0.0
        %1416 = vmatpush1.msra.mxu0 0.0
        %1417 = vmatprep.subr.mxu0 0.0
        %1418 = vmatpush1.msra.mxu0 0.0
        %1419 = vmatprep.subr.mxu0 0.0
        %1420 = vmatpush1.msra.mxu0 0.0
        %1421 = vmatprep.subr.mxu0 0.0
        %1422 = vmatpush1.msra.mxu0 0.0
        %1423 = vmatprep.subr.mxu0 0.0
        %1424 = vmatpush1.msra.mxu0 0.0
        %1425 = vmatprep.subr.mxu0 0.0
        %1426 = vmatpush1.msra.mxu0 0.0
        %1427 = vmatprep.subr.mxu0 0.0
        %1428 = vmatpush1.msra.mxu0 0.0
        %1429 = vmatprep.subr.mxu0 0.0
        %1430 = vmatpush1.msra.mxu0 0.0
        %1431 = vmatprep.subr.mxu0 0.0
        %1432 = vmatpush1.msra.mxu0 0.0
        %1433 = vmatprep.subr.mxu0 0.0
        %1434 = vmatpush1.msra.mxu0 0.0
        %1435 = vmatprep.subr.mxu0 0.0
        %1436 = vmatpush1.msra.mxu0 0.0
        %1437 = vmatprep.subr.mxu0 0.0
        %1438 = vmatpush1.msra.mxu0 0.0
        %1439 = vmatprep.subr.mxu0 0.0
        %1440 = vmatpush1.msra.mxu0 0.0
        %1441 = vmatprep.mubr.f32.mxu0 0.0
        %1442 = vmatmul.mubr.f32.gmra.mrb[0].mxu0 %v1322
        %v1443 = vpop.f32.mrb[0].mxu0
        %v1444 = vadd.f32 %v1375, %v1443
        %v1445 = vpop.f32.mrb[0].mxu0
        %1446 = vmatprep.mubr.f32.mxu0 0.0
        %1447 = vmatmul.mubr.f32.gmra.mrb[0].mxu0 %v1323
        %v1448 = vpop.f32.mrb[0].mxu0
        %v1449 = vadd.f32 %v1375, %v1448
        %v1450 = vpop.f32.mrb[0].mxu0
        %1451 = vmatprep.mubr.f32.mxu0 0.0
        %1452 = vmatmul.mubr.f32.gmra.mrb[0].mxu0 %v1324
        %v1453 = vpop.f32.mrb[0].mxu0
        %v1454 = vadd.f32 %v1375, %v1453
        %v1455 = vpop.f32.mrb[0].mxu0
        %1456 = vmatprep.mubr.f32.mxu0 0.0
        %1457 = vmatmul.mubr.f32.gmra.mrb[0].mxu0 %v1325
        %v1458 = vpop.f32.mrb[0].mxu0
        %v1459 = vadd.f32 %v1375, %v1458
        %v1460 = vpop.f32.mrb[0].mxu0
        %1461 = vmatprep.mubr.f32.mxu0 0.0
        %1462 = vmatmul.mubr.f32.gmra.mrb[0].mxu0 %v1326
        %v1463 = vpop.f32.mrb[0].mxu0
        %v1464 = vadd.f32 %v1375, %v1463
        %v1465 = vpop.f32.mrb[0].mxu0
        %1466 = vmatprep.mubr.f32.mxu0 0.0
        %1467 = vmatmul.mubr.f32.gmra.mrb[0].mxu0 %v1327
        %v1468 = vpop.f32.mrb[0].mxu0
        %v1469 = vadd.f32 %v1375, %v1468
        %v1470 = vpop.f32.mrb[0].mxu0
        %1471 = vmatprep.mubr.f32.mxu0 0.0
        %1472 = vmatmul.mubr.f32.gmra.mrb[0].mxu0 %v1328
        %v1473 = vpop.f32.mrb[0].mxu0
        %v1474 = vadd.f32 %v1375, %v1473
        %v1475 = vpop.f32.mrb[0].mxu0
        %1476 = vmatprep.mubr.f32.mxu0 0.0
        %1477 = vmatmul.mubr.f32.gmra.mrb[0].mxu0 %v1329
        %v1478 = vpop.f32.mrb[0].mxu0
        %v1479 = vadd.f32 %v1375, %v1478
        %v1480 = vpop.f32.mrb[0].mxu0
        %1481 = vmatprep.mubr.f32.mxu0 0.0
        %1482 = vmatmul.mubr.f32.gmra.mrb[0].mxu0 %v1330
        %v1483 = vpop.f32.mrb[0].mxu0
        %v1484 = vadd.f32 %v1375, %v1483
        %v1485 = vpop.f32.mrb[0].mxu0
        %1486 = vmatprep.mubr.f32.mxu0 0.0
        %1487 = vmatmul.mubr.f32.gmra.mrb[0].mxu0 %v1331
        %v1488 = vpop.f32.mrb[0].mxu0
        %v1489 = vadd.f32 %v1375, %v1488
        %v1490 = vpop.f32.mrb[0].mxu0
        %1491 = vmatprep.mubr.f32.mxu0 0.0
        %1492 = vmatmul.mubr.f32.gmra.mrb[0].mxu0 %v1332
        %v1493 = vpop.f32.mrb[0].mxu0
        %v1494 = vadd.f32 %v1375, %v1493
        %v1495 = vpop.f32.mrb[0].mxu0
        %1496 = vmatprep.mubr.f32.mxu0 0.0
        %1497 = vmatmul.mubr.f32.gmra.mrb[0].mxu0 %v1333
        %v1498 = vpop.f32.mrb[0].mxu0
        %v1499 = vadd.f32 %v1375, %v1498
        %v1500 = vpop.f32.mrb[0].mxu0
        %1501 = vmatprep.mubr.f32.mxu0 0.0
        %1502 = vmatmul.mubr.f32.gmra.mrb[0].mxu0 %v1334
        %v1503 = vpop.f32.mrb[0].mxu0
        %v1504 = vadd.f32 %v1375, %v1503
        %v1505 = vpop.f32.mrb[0].mxu0
        %1506 = vmatprep.mubr.f32.mxu0 0.0
        %1507 = vmatmul.mubr.f32.gmra.mrb[0].mxu0 %v1335
        %v1508 = vpop.f32.mrb[0].mxu0
        %v1509 = vadd.f32 %v1375, %v1508
        %v1510 = vpop.f32.mrb[0].mxu0
        %1511 = vmatprep.mubr.f32.mxu0 0.0
        %1512 = vmatmul.mubr.f32.gmra.mrb[0].mxu0 %v1336
        %v1513 = vpop.f32.mrb[0].mxu0
        %v1514 = vadd.f32 %v1375, %v1513
        %v1515 = vpop.f32.mrb[0].mxu0
        %1516 = vmatprep.mubr.f32.mxu0 0.0
        %1517 = vmatmul.mubr.f32.gmra.mrb[0].mxu0 %v1337
        %v1518 = vpop.f32.mrb[0].mxu0
        %v1519 = vadd.f32 %v1375, %v1518
        %v1520 = vpop.f32.mrb[0].mxu0
        %1521 = vmatprep.mubr.f32.mxu0 0.0
        %1522 = vmatmul.mubr.f32.gmra.mrb[0].mxu0 %v1338
        %v1523 = vpop.f32.mrb[0].mxu0
        %v1524 = vadd.f32 %v1375, %v1523
        %v1525 = vpop.f32.mrb[0].mxu0
        %1526 = vmatprep.mubr.f32.mxu0 0.0
        %1527 = vmatmul.mubr.f32.gmra.mrb[0].mxu0 %v1339
        %v1528 = vpop.f32.mrb[0].mxu0
        %v1529 = vadd.f32 %v1375, %v1528
        %v1530 = vpop.f32.mrb[0].mxu0
        %1531 = vmatprep.mubr.f32.mxu0 0.0
        %1532 = vmatmul.mubr.f32.gmra.mrb[0].mxu0 %v1340
        %v1533 = vpop.f32.mrb[0].mxu0
        %v1534 = vadd.f32 %v1375, %v1533
        %v1535 = vpop.f32.mrb[0].mxu0
        %1536 = vmatprep.mubr.f32.mxu0 0.0
        %1537 = vmatmul.mubr.f32.gmra.mrb[0].mxu0 %v1341
        %v1538 = vpop.f32.mrb[0].mxu0
        %v1539 = vadd.f32 %v1375, %v1538
        %v1540 = vpop.f32.mrb[0].mxu0
        %1541 = vmatprep.mubr.f32.mxu0 0.0
        %1542 = vmatmul.mubr.f32.gmra.mrb[0].mxu0 %v1342
        %v1543 = vpop.f32.mrb[0].mxu0
        %v1544 = vadd.f32 %v1375, %v1543
        %v1545 = vpop.f32.mrb[0].mxu0
        %1546 = vmatprep.mubr.f32.mxu0 0.0
        %1547 = vmatmul.mubr.f32.gmra.mrb[0].mxu0 %v1343
        %v1548 = vpop.f32.mrb[0].mxu0
        %v1549 = vadd.f32 %v1375, %v1548
        %v1550 = vpop.f32.mrb[0].mxu0
        %1551 = vmatprep.mubr.f32.mxu0 0.0
        %1552 = vmatmul.mubr.f32.gmra.mrb[0].mxu0 %v1344
        %v1553 = vpop.f32.mrb[0].mxu0
        %v1554 = vadd.f32 %v1375, %v1553
        %v1555 = vpop.f32.mrb[0].mxu0
        %1556 = vmatprep.mubr.f32.mxu0 0.0
        %1557 = vmatmul.mubr.f32.gmra.mrb[0].mxu0 %v1345
        %v1558 = vpop.f32.mrb[0].mxu0
        %v1559 = vadd.f32 %v1375, %v1558
        %v1560 = vpop.f32.mrb[0].mxu0
        %1561 = vmatprep.mubr.f32.mxu0 0.0
        %1562 = vmatmul.mubr.f32.gmra.mrb[0].mxu0 %v1346
        %v1563 = vpop.f32.mrb[0].mxu0
        %v1564 = vadd.f32 %v1375, %v1563
        %v1565 = vpop.f32.mrb[0].mxu0
        %1566 = vmatprep.mubr.f32.mxu0 0.0
        %1567 = vmatmul.mubr.f32.gmra.mrb[0].mxu0 %v1347
        %v1568 = vpop.f32.mrb[0].mxu0
        %v1569 = vadd.f32 %v1375, %v1568
        %v1570 = vpop.f32.mrb[0].mxu0
        %1571 = vmatprep.mubr.f32.mxu0 0.0
        %1572 = vmatmul.mubr.f32.gmra.mrb[0].mxu0 %v1348
        %v1573 = vpop.f32.mrb[0].mxu0
        %v1574 = vadd.f32 %v1375, %v1573
        %v1575 = vpop.f32.mrb[0].mxu0
        %1576 = vmatprep.mubr.f32.mxu0 0.0
        %1577 = vmatmul.mubr.f32.gmra.mrb[0].mxu0 %v1349
        %v1578 = vpop.f32.mrb[0].mxu0
        %v1579 = vadd.f32 %v1375, %v1578
        %v1580 = vpop.f32.mrb[0].mxu0
        %1581 = vmatprep.mubr.f32.mxu0 0.0
        %1582 = vmatmul.mubr.f32.gmra.mrb[0].mxu0 %v1350
        %v1583 = vpop.f32.mrb[0].mxu0
        %v1584 = vadd.f32 %v1375, %v1583
        %v1585 = vpop.f32.mrb[0].mxu0
        %1586 = vmatprep.mubr.f32.mxu0 0.0
        %1587 = vmatmul.mubr.f32.gmra.mrb[0].mxu0 %v1351
        %v1588 = vpop.f32.mrb[0].mxu0
        %v1589 = vadd.f32 %v1375, %v1588
        %v1590 = vpop.f32.mrb[0].mxu0
        %1591 = vmatprep.mubr.f32.mxu0 0.0
        %1592 = vmatmul.mubr.f32.gmra.mrb[0].mxu0 %v1352
        %v1593 = vpop.f32.mrb[0].mxu0
        %v1594 = vadd.f32 %v1375, %v1593
        %v1595 = vpop.f32.mrb[0].mxu0
        %1596 = vmatprep.mubr.f32.mxu0 0.0
        %1597 = vmatmul.mubr.f32.gmra.mrb[0].mxu0 %v1353
        %v1598 = vpop.f32.mrb[0].mxu0
        %v1599 = vadd.f32 %v1375, %v1598
        %v1600 = vpop.f32.mrb[0].mxu0
        %1601 = vdwg.mxu0
        %v1602 = vmax.f32 %v1444, 0.0
        %v1603 = vmax.f32 %v1449, 0.0
        %v1604 = vmax.f32 %v1454, 0.0
        %v1605 = vmax.f32 %v1459, 0.0
        %v1606 = vmax.f32 %v1464, 0.0
        %v1607 = vmax.f32 %v1469, 0.0
        %v1608 = vmax.f32 %v1474, 0.0
        %v1609 = vmax.f32 %v1479, 0.0
        %v1610 = vmax.f32 %v1484, 0.0
        %v1611 = vmax.f32 %v1489, 0.0
        %v1612 = vmax.f32 %v1494, 0.0
        %v1613 = vmax.f32 %v1499, 0.0
        %v1614 = vmax.f32 %v1504, 0.0
        %v1615 = vmax.f32 %v1509, 0.0
        %v1616 = vmax.f32 %v1514, 0.0
        %v1617 = vmax.f32 %v1519, 0.0
        %v1618 = vmax.f32 %v1524, 0.0
        %v1619 = vmax.f32 %v1529, 0.0
        %v1620 = vmax.f32 %v1534, 0.0
        %v1621 = vmax.f32 %v1539, 0.0
        %v1622 = vmax.f32 %v1544, 0.0
        %v1623 = vmax.f32 %v1549, 0.0
        %v1624 = vmax.f32 %v1554, 0.0
        %v1625 = vmax.f32 %v1559, 0.0
        %v1626 = vmax.f32 %v1564, 0.0
        %v1627 = vmax.f32 %v1569, 0.0
        %v1628 = vmax.f32 %v1574, 0.0
        %v1629 = vmax.f32 %v1579, 0.0
        %v1630 = vmax.f32 %v1584, 0.0
        %v1631 = vmax.f32 %v1589, 0.0
        %v1632 = vmax.f32 %v1594, 0.0
        %v1633 = vmax.f32 %v1599, 0.0
        %v1634 = vld [vmem:[%s5] sm:$0xff]
        %v1635 = vld [vmem:[%s5 + $0x8] sm:$0xff]
        %v1636 = vld [vmem:[%s5 + $0x10] sm:$0xff]
        %v1637 = vld [vmem:[%s5 + $0x18] sm:$0xff]
        %v1638 = vld [vmem:[%s5 + $0x20] sm:$0xff]
        %v1639 = vld [vmem:[%s5 + $0x28] sm:$0xff]
        %v1640 = vld [vmem:[%s5 + $0x30] sm:$0xff]
        %v1641 = vld [vmem:[%s5 + $0x38] sm:$0xff]
        %v1642 = vld [vmem:[%s5 + $0x40] sm:$0xff]
        %v1643 = vld [vmem:[%s5 + $0x48] sm:$0xff]
        %v1644 = vld [vmem:[%s5 + $0x50] sm:$0xff]
        %v1645 = vld [vmem:[%s5 + $0x58] sm:$0xff]
        %v1646 = vld [vmem:[%s5 + $0x60] sm:$0xff]
        %v1647 = vld [vmem:[%s5 + $0x68] sm:$0xff]
        %v1648 = vld [vmem:[%s5 + $0x70] sm:$0xff]
        %v1649 = vld [vmem:[%s5 + $0x78] sm:$0xff]
        %1650 = vmatprep.subr.mxu0 0.0
        %1651 = vmatpush1.msra.mxu0 %v1634
        %1652 = vmatprep.subr.mxu0 0.0
        %1653 = vmatpush1.msra.mxu0 %v1635
        %1654 = vmatprep.subr.mxu0 0.0
        %1655 = vmatpush1.msra.mxu0 %v1636
        %1656 = vmatprep.subr.mxu0 0.0
        %1657 = vmatpush1.msra.mxu0 %v1637
        %1658 = vmatprep.subr.mxu0 0.0
        %1659 = vmatpush1.msra.mxu0 %v1638
        %1660 = vmatprep.subr.mxu0 0.0
        %1661 = vmatpush1.msra.mxu0 %v1639
        %1662 = vmatprep.subr.mxu0 0.0
        %1663 = vmatpush1.msra.mxu0 %v1640
        %1664 = vmatprep.subr.mxu0 0.0
        %1665 = vmatpush1.msra.mxu0 %v1641
        %1666 = vmatprep.subr.mxu0 0.0
        %1667 = vmatpush1.msra.mxu0 %v1642
        %1668 = vmatprep.subr.mxu0 0.0
        %1669 = vmatpush1.msra.mxu0 %v1643
        %1670 = vmatprep.subr.mxu0 0.0
        %1671 = vmatpush1.msra.mxu0 %v1644
        %1672 = vmatprep.subr.mxu0 0.0
        %1673 = vmatpush1.msra.mxu0 %v1645
        %1674 = vmatprep.subr.mxu0 0.0
        %1675 = vmatpush1.msra.mxu0 %v1646
        %1676 = vmatprep.subr.mxu0 0.0
        %1677 = vmatpush1.msra.mxu0 %v1647
        %1678 = vmatprep.subr.mxu0 0.0
        %1679 = vmatpush1.msra.mxu0 %v1648
        %1680 = vmatprep.subr.mxu0 0.0
        %1681 = vmatpush1.msra.mxu0 %v1649
        %1682 = vmatprep.subr.mxu0 0.0
        %1683 = vmatpush1.msra.mxu0 0.0
        %1684 = vmatprep.subr.mxu0 0.0
        %1685 = vmatpush1.msra.mxu0 0.0
        %1686 = vmatprep.subr.mxu0 0.0
        %1687 = vmatpush1.msra.mxu0 0.0
        %1688 = vmatprep.subr.mxu0 0.0
        %1689 = vmatpush1.msra.mxu0 0.0
        %1690 = vmatprep.subr.mxu0 0.0
        %1691 = vmatpush1.msra.mxu0 0.0
        %1692 = vmatprep.subr.mxu0 0.0
        %1693 = vmatpush1.msra.mxu0 0.0
        %1694 = vmatprep.subr.mxu0 0.0
        %1695 = vmatpush1.msra.mxu0 0.0
        %1696 = vmatprep.subr.mxu0 0.0
        %1697 = vmatpush1.msra.mxu0 0.0
        %1698 = vmatprep.subr.mxu0 0.0
        %1699 = vmatpush1.msra.mxu0 0.0
        %1700 = vmatprep.subr.mxu0 0.0
        %1701 = vmatpush1.msra.mxu0 0.0
        %1702 = vmatprep.subr.mxu0 0.0
        %1703 = vmatpush1.msra.mxu0 0.0
        %1704 = vmatprep.subr.mxu0 0.0
        %1705 = vmatpush1.msra.mxu0 0.0
        %1706 = vmatprep.subr.mxu0 0.0
        %1707 = vmatpush1.msra.mxu0 0.0
        %1708 = vmatprep.subr.mxu0 0.0
        %1709 = vmatpush1.msra.mxu0 0.0
        %1710 = vmatprep.subr.mxu0 0.0
        %1711 = vmatpush1.msra.mxu0 0.0
        %1712 = vmatprep.subr.mxu0 0.0
        %1713 = vmatpush1.msra.mxu0 0.0
        %1714 = vmatprep.mubr.f32.mxu0 0.0
        %1715 = vmatmul.mubr.f32.gmra.mrb[0].mxu0 %v1602
        %v1716 = vpop.f32.mrb[0].mxu0
        %v1717 = vadd.f32 0.0, %v1716
        %v1718 = vpop.f32.mrb[0].mxu0
        %1719 = vmatprep.mubr.f32.mxu0 0.0
        %1720 = vmatmul.mubr.f32.gmra.mrb[0].mxu0 %v1603
        %v1721 = vpop.f32.mrb[0].mxu0
        %v1722 = vadd.f32 0.0, %v1721
        %v1723 = vpop.f32.mrb[0].mxu0
        %1724 = vmatprep.mubr.f32.mxu0 0.0
        %1725 = vmatmul.mubr.f32.gmra.mrb[0].mxu0 %v1604
        %v1726 = vpop.f32.mrb[0].mxu0
        %v1727 = vadd.f32 0.0, %v1726
        %v1728 = vpop.f32.mrb[0].mxu0
        %1729 = vmatprep.mubr.f32.mxu0 0.0
        %1730 = vmatmul.mubr.f32.gmra.mrb[0].mxu0 %v1605
        %v1731 = vpop.f32.mrb[0].mxu0
        %v1732 = vadd.f32 0.0, %v1731
        %v1733 = vpop.f32.mrb[0].mxu0
        %1734 = vmatprep.mubr.f32.mxu0 0.0
        %1735 = vmatmul.mubr.f32.gmra.mrb[0].mxu0 %v1606
        %v1736 = vpop.f32.mrb[0].mxu0
        %v1737 = vadd.f32 0.0, %v1736
        %v1738 = vpop.f32.mrb[0].mxu0
        %1739 = vmatprep.mubr.f32.mxu0 0.0
        %1740 = vmatmul.mubr.f32.gmra.mrb[0].mxu0 %v1607
        %v1741 = vpop.f32.mrb[0].mxu0
        %v1742 = vadd.f32 0.0, %v1741
        %v1743 = vpop.f32.mrb[0].mxu0
        %1744 = vmatprep.mubr.f32.mxu0 0.0
        %1745 = vmatmul.mubr.f32.gmra.mrb[0].mxu0 %v1608
        %v1746 = vpop.f32.mrb[0].mxu0
        %v1747 = vadd.f32 0.0, %v1746
        %v1748 = vpop.f32.mrb[0].mxu0
        %1749 = vmatprep.mubr.f32.mxu0 0.0
        %1750 = vmatmul.mubr.f32.gmra.mrb[0].mxu0 %v1609
        %v1751 = vpop.f32.mrb[0].mxu0
        %v1752 = vadd.f32 0.0, %v1751
        %v1753 = vpop.f32.mrb[0].mxu0
        %1754 = vmatprep.mubr.f32.mxu0 0.0
        %1755 = vmatmul.mubr.f32.gmra.mrb[0].mxu0 %v1610
        %v1756 = vpop.f32.mrb[0].mxu0
        %v1757 = vadd.f32 0.0, %v1756
        %v1758 = vpop.f32.mrb[0].mxu0
        %1759 = vmatprep.mubr.f32.mxu0 0.0
        %1760 = vmatmul.mubr.f32.gmra.mrb[0].mxu0 %v1611
        %v1761 = vpop.f32.mrb[0].mxu0
        %v1762 = vadd.f32 0.0, %v1761
        %v1763 = vpop.f32.mrb[0].mxu0
        %1764 = vmatprep.mubr.f32.mxu0 0.0
        %1765 = vmatmul.mubr.f32.gmra.mrb[0].mxu0 %v1612
        %v1766 = vpop.f32.mrb[0].mxu0
        %v1767 = vadd.f32 0.0, %v1766
        %v1768 = vpop.f32.mrb[0].mxu0
        %1769 = vmatprep.mubr.f32.mxu0 0.0
        %1770 = vmatmul.mubr.f32.gmra.mrb[0].mxu0 %v1613
        %v1771 = vpop.f32.mrb[0].mxu0
        %v1772 = vadd.f32 0.0, %v1771
        %v1773 = vpop.f32.mrb[0].mxu0
        %1774 = vmatprep.mubr.f32.mxu0 0.0
        %1775 = vmatmul.mubr.f32.gmra.mrb[0].mxu0 %v1614
        %v1776 = vpop.f32.mrb[0].mxu0
        %v1777 = vadd.f32 0.0, %v1776
        %v1778 = vpop.f32.mrb[0].mxu0
        %1779 = vmatprep.mubr.f32.mxu0 0.0
        %1780 = vmatmul.mubr.f32.gmra.mrb[0].mxu0 %v1615
        %v1781 = vpop.f32.mrb[0].mxu0
        %v1782 = vadd.f32 0.0, %v1781
        %v1783 = vpop.f32.mrb[0].mxu0
        %1784 = vmatprep.mubr.f32.mxu0 0.0
        %1785 = vmatmul.mubr.f32.gmra.mrb[0].mxu0 %v1616
        %v1786 = vpop.f32.mrb[0].mxu0
        %v1787 = vadd.f32 0.0, %v1786
        %v1788 = vpop.f32.mrb[0].mxu0
        %1789 = vmatprep.mubr.f32.mxu0 0.0
        %1790 = vmatmul.mubr.f32.gmra.mrb[0].mxu0 %v1617
        %v1791 = vpop.f32.mrb[0].mxu0
        %v1792 = vadd.f32 0.0, %v1791
        %v1793 = vpop.f32.mrb[0].mxu0
        %1794 = vmatprep.mubr.f32.mxu0 0.0
        %1795 = vmatmul.mubr.f32.gmra.mrb[0].mxu0 %v1618
        %v1796 = vpop.f32.mrb[0].mxu0
        %v1797 = vadd.f32 0.0, %v1796
        %v1798 = vpop.f32.mrb[0].mxu0
        %1799 = vmatprep.mubr.f32.mxu0 0.0
        %1800 = vmatmul.mubr.f32.gmra.mrb[0].mxu0 %v1619
        %v1801 = vpop.f32.mrb[0].mxu0
        %v1802 = vadd.f32 0.0, %v1801
        %v1803 = vpop.f32.mrb[0].mxu0
        %1804 = vmatprep.mubr.f32.mxu0 0.0
        %1805 = vmatmul.mubr.f32.gmra.mrb[0].mxu0 %v1620
        %v1806 = vpop.f32.mrb[0].mxu0
        %v1807 = vadd.f32 0.0, %v1806
        %v1808 = vpop.f32.mrb[0].mxu0
        %1809 = vmatprep.mubr.f32.mxu0 0.0
        %1810 = vmatmul.mubr.f32.gmra.mrb[0].mxu0 %v1621
        %v1811 = vpop.f32.mrb[0].mxu0
        %v1812 = vadd.f32 0.0, %v1811
        %v1813 = vpop.f32.mrb[0].mxu0
        %1814 = vmatprep.mubr.f32.mxu0 0.0
        %1815 = vmatmul.mubr.f32.gmra.mrb[0].mxu0 %v1622
        %v1816 = vpop.f32.mrb[0].mxu0
        %v1817 = vadd.f32 0.0, %v1816
        %v1818 = vpop.f32.mrb[0].mxu0
        %1819 = vmatprep.mubr.f32.mxu0 0.0
        %1820 = vmatmul.mubr.f32.gmra.mrb[0].mxu0 %v1623
        %v1821 = vpop.f32.mrb[0].mxu0
        %v1822 = vadd.f32 0.0, %v1821
        %v1823 = vpop.f32.mrb[0].mxu0
        %1824 = vmatprep.mubr.f32.mxu0 0.0
        %1825 = vmatmul.mubr.f32.gmra.mrb[0].mxu0 %v1624
        %v1826 = vpop.f32.mrb[0].mxu0
        %v1827 = vadd.f32 0.0, %v1826
        %v1828 = vpop.f32.mrb[0].mxu0
        %1829 = vmatprep.mubr.f32.mxu0 0.0
        %1830 = vmatmul.mubr.f32.gmra.mrb[0].mxu0 %v1625
        %v1831 = vpop.f32.mrb[0].mxu0
        %v1832 = vadd.f32 0.0, %v1831
        %v1833 = vpop.f32.mrb[0].mxu0
        %1834 = vmatprep.mubr.f32.mxu0 0.0
        %1835 = vmatmul.mubr.f32.gmra.mrb[0].mxu0 %v1626
        %v1836 = vpop.f32.mrb[0].mxu0
        %v1837 = vadd.f32 0.0, %v1836
        %v1838 = vpop.f32.mrb[0].mxu0
        %1839 = vmatprep.mubr.f32.mxu0 0.0
        %1840 = vmatmul.mubr.f32.gmra.mrb[0].mxu0 %v1627
        %v1841 = vpop.f32.mrb[0].mxu0
        %v1842 = vadd.f32 0.0, %v1841
        %v1843 = vpop.f32.mrb[0].mxu0
        %1844 = vmatprep.mubr.f32.mxu0 0.0
        %1845 = vmatmul.mubr.f32.gmra.mrb[0].mxu0 %v1628
        %v1846 = vpop.f32.mrb[0].mxu0
        %v1847 = vadd.f32 0.0, %v1846
        %v1848 = vpop.f32.mrb[0].mxu0
        %1849 = vmatprep.mubr.f32.mxu0 0.0
        %1850 = vmatmul.mubr.f32.gmra.mrb[0].mxu0 %v1629
        %v1851 = vpop.f32.mrb[0].mxu0
        %v1852 = vadd.f32 0.0, %v1851
        %v1853 = vpop.f32.mrb[0].mxu0
        %1854 = vmatprep.mubr.f32.mxu0 0.0
        %1855 = vmatmul.mubr.f32.gmra.mrb[0].mxu0 %v1630
        %v1856 = vpop.f32.mrb[0].mxu0
        %v1857 = vadd.f32 0.0, %v1856
        %v1858 = vpop.f32.mrb[0].mxu0
        %1859 = vmatprep.mubr.f32.mxu0 0.0
        %1860 = vmatmul.mubr.f32.gmra.mrb[0].mxu0 %v1631
        %v1861 = vpop.f32.mrb[0].mxu0
        %v1862 = vadd.f32 0.0, %v1861
        %v1863 = vpop.f32.mrb[0].mxu0
        %1864 = vmatprep.mubr.f32.mxu0 0.0
        %1865 = vmatmul.mubr.f32.gmra.mrb[0].mxu0 %v1632
        %v1866 = vpop.f32.mrb[0].mxu0
        %v1867 = vadd.f32 0.0, %v1866
        %v1868 = vpop.f32.mrb[0].mxu0
        %1869 = vmatprep.mubr.f32.mxu0 0.0
        %1870 = vmatmul.mubr.f32.gmra.mrb[0].mxu0 %v1633
        %v1871 = vpop.f32.mrb[0].mxu0
        %v1872 = vadd.f32 0.0, %v1871
        %v1873 = vpop.f32.mrb[0].mxu0
        %1874 = vdwg.mxu0
        %s1875 = smul.u32 %s23, 256
        %s1876 = scalar_lea.vmem [#allocation2], %s1875
        %1877 = vst [vmem:[%s1876] sm:$0xff] %v1717
        %1878 = vst [vmem:[%s1876 + $0x8] sm:$0xff] %v1722
        %1879 = vst [vmem:[%s1876 + $0x10] sm:$0xff] %v1727
        %1880 = vst [vmem:[%s1876 + $0x18] sm:$0xff] %v1732
        %1881 = vst [vmem:[%s1876 + $0x20] sm:$0xff] %v1737
        %1882 = vst [vmem:[%s1876 + $0x28] sm:$0xff] %v1742
        %1883 = vst [vmem:[%s1876 + $0x30] sm:$0xff] %v1747
        %1884 = vst [vmem:[%s1876 + $0x38] sm:$0xff] %v1752
        %1885 = vst [vmem:[%s1876 + $0x40] sm:$0xff] %v1757
        %1886 = vst [vmem:[%s1876 + $0x48] sm:$0xff] %v1762
        %1887 = vst [vmem:[%s1876 + $0x50] sm:$0xff] %v1767
        %1888 = vst [vmem:[%s1876 + $0x58] sm:$0xff] %v1772
        %1889 = vst [vmem:[%s1876 + $0x60] sm:$0xff] %v1777
        %1890 = vst [vmem:[%s1876 + $0x68] sm:$0xff] %v1782
        %1891 = vst [vmem:[%s1876 + $0x70] sm:$0xff] %v1787
        %1892 = vst [vmem:[%s1876 + $0x78] sm:$0xff] %v1792
        %1893 = vst [vmem:[%s1876 + $0x80] sm:$0xff] %v1797
        %1894 = vst [vmem:[%s1876 + $0x88] sm:$0xff] %v1802
        %1895 = vst [vmem:[%s1876 + $0x90] sm:$0xff] %v1807
        %1896 = vst [vmem:[%s1876 + $0x98] sm:$0xff] %v1812
        %1897 = vst [vmem:[%s1876 + $0xa0] sm:$0xff] %v1817
        %1898 = vst [vmem:[%s1876 + $0xa8] sm:$0xff] %v1822
        %1899 = vst [vmem:[%s1876 + $0xb0] sm:$0xff] %v1827
        %1900 = vst [vmem:[%s1876 + $0xb8] sm:$0xff] %v1832
        %1901 = vst [vmem:[%s1876 + $0xc0] sm:$0xff] %v1837
        %1902 = vst [vmem:[%s1876 + $0xc8] sm:$0xff] %v1842
        %1903 = vst [vmem:[%s1876 + $0xd0] sm:$0xff] %v1847
        %1904 = vst [vmem:[%s1876 + $0xd8] sm:$0xff] %v1852
        %1905 = vst [vmem:[%s1876 + $0xe0] sm:$0xff] %v1857
        %1906 = vst [vmem:[%s1876 + $0xe8] sm:$0xff] %v1862
        %1907 = vst [vmem:[%s1876 + $0xf0] sm:$0xff] %v1867
        %1908 = vst [vmem:[%s1876 + $0xf8] sm:$0xff] %v1872
      $region52: #{sage_forward.1} parent=47 // pred_fallthru
        _
      %p1909 = scmp.eq.s32.totalorder %s22, 1
      // Predicated region
      $region53: #{sage_forward.1} parent=47 // pred_check
        %p1910 = pneg %p1909
      $region54: #{sage_forward.1} parent=47 // pred_check_branch
        %1912 = sbr.rel (%p1910) target = $region56
      $region55: #{sage_forward.1} parent=47 // pred_region
        %v1913 = vld [vmem:[#allocation2] sm:$0xff]
        %v1914 = vld [vmem:[#allocation2 + $0x8] sm:$0xff]
        %v1915 = vld [vmem:[#allocation2 + $0x10] sm:$0xff]
        %v1916 = vld [vmem:[#allocation2 + $0x18] sm:$0xff]
        %v1917 = vld [vmem:[#allocation2 + $0x20] sm:$0xff]
        %v1918 = vld [vmem:[#allocation2 + $0x28] sm:$0xff]
        %v1919 = vld [vmem:[#allocation2 + $0x30] sm:$0xff]
        %v1920 = vld [vmem:[#allocation2 + $0x38] sm:$0xff]
        %v1921 = vld [vmem:[#allocation2 + $0x40] sm:$0xff]
        %v1922 = vld [vmem:[#allocation2 + $0x48] sm:$0xff]
        %v1923 = vld [vmem:[#allocation2 + $0x50] sm:$0xff]
        %v1924 = vld [vmem:[#allocation2 + $0x58] sm:$0xff]
        %v1925 = vld [vmem:[#allocation2 + $0x60] sm:$0xff]
        %v1926 = vld [vmem:[#allocation2 + $0x68] sm:$0xff]
        %v1927 = vld [vmem:[#allocation2 + $0x70] sm:$0xff]
        %v1928 = vld [vmem:[#allocation2 + $0x78] sm:$0xff]
        %v1929 = vld [vmem:[#allocation2 + $0x80] sm:$0xff]
        %v1930 = vld [vmem:[#allocation2 + $0x88] sm:$0xff]
        %v1931 = vld [vmem:[#allocation2 + $0x90] sm:$0xff]
        %v1932 = vld [vmem:[#allocation2 + $0x98] sm:$0xff]
        %v1933 = vld [vmem:[#allocation2 + $0xa0] sm:$0xff]
        %v1934 = vld [vmem:[#allocation2 + $0xa8] sm:$0xff]
        %v1935 = vld [vmem:[#allocation2 + $0xb0] sm:$0xff]
        %v1936 = vld [vmem:[#allocation2 + $0xb8] sm:$0xff]
        %v1937 = vld [vmem:[#allocation2 + $0xc0] sm:$0xff]
        %v1938 = vld [vmem:[#allocation2 + $0xc8] sm:$0xff]
        %v1939 = vld [vmem:[#allocation2 + $0xd0] sm:$0xff]
        %v1940 = vld [vmem:[#allocation2 + $0xd8] sm:$0xff]
        %v1941 = vld [vmem:[#allocation2 + $0xe0] sm:$0xff]
        %v1942 = vld [vmem:[#allocation2 + $0xe8] sm:$0xff]
        %v1943 = vld [vmem:[#allocation2 + $0xf0] sm:$0xff]
        %v1944 = vld [vmem:[#allocation2 + $0xf8] sm:$0xff]
        %v1945 = vld [vmem:[#allocation2 + $0x100] sm:$0xff]
        %v1946 = vld [vmem:[#allocation2 + $0x108] sm:$0xff]
        %v1947 = vld [vmem:[#allocation2 + $0x110] sm:$0xff]
        %v1948 = vld [vmem:[#allocation2 + $0x118] sm:$0xff]
        %v1949 = vld [vmem:[#allocation2 + $0x120] sm:$0xff]
        %v1950 = vld [vmem:[#allocation2 + $0x128] sm:$0xff]
        %v1951 = vld [vmem:[#allocation2 + $0x130] sm:$0xff]
        %v1952 = vld [vmem:[#allocation2 + $0x138] sm:$0xff]
        %v1953 = vld [vmem:[#allocation2 + $0x140] sm:$0xff]
        %v1954 = vld [vmem:[#allocation2 + $0x148] sm:$0xff]
        %v1955 = vld [vmem:[#allocation2 + $0x150] sm:$0xff]
        %v1956 = vld [vmem:[#allocation2 + $0x158] sm:$0xff]
        %v1957 = vld [vmem:[#allocation2 + $0x160] sm:$0xff]
        %v1958 = vld [vmem:[#allocation2 + $0x168] sm:$0xff]
        %v1959 = vld [vmem:[#allocation2 + $0x170] sm:$0xff]
        %v1960 = vld [vmem:[#allocation2 + $0x178] sm:$0xff]
        %v1961 = vld [vmem:[#allocation2 + $0x180] sm:$0xff]
        %v1962 = vld [vmem:[#allocation2 + $0x188] sm:$0xff]
        %v1963 = vld [vmem:[#allocation2 + $0x190] sm:$0xff]
        %v1964 = vld [vmem:[#allocation2 + $0x198] sm:$0xff]
        %v1965 = vld [vmem:[#allocation2 + $0x1a0] sm:$0xff]
        %v1966 = vld [vmem:[#allocation2 + $0x1a8] sm:$0xff]
        %v1967 = vld [vmem:[#allocation2 + $0x1b0] sm:$0xff]
        %v1968 = vld [vmem:[#allocation2 + $0x1b8] sm:$0xff]
        %v1969 = vld [vmem:[#allocation2 + $0x1c0] sm:$0xff]
        %v1970 = vld [vmem:[#allocation2 + $0x1c8] sm:$0xff]
        %v1971 = vld [vmem:[#allocation2 + $0x1d0] sm:$0xff]
        %v1972 = vld [vmem:[#allocation2 + $0x1d8] sm:$0xff]
        %v1973 = vld [vmem:[#allocation2 + $0x1e0] sm:$0xff]
        %v1974 = vld [vmem:[#allocation2 + $0x1e8] sm:$0xff]
        %v1975 = vld [vmem:[#allocation2 + $0x1f0] sm:$0xff]
        %v1976 = vld [vmem:[#allocation2 + $0x1f8] sm:$0xff]
        %1977 = vmatprep.subr.mxu0 0.0
        %1978 = vmatpush1.msra.mxu0 %v1913
        %1979 = vmatprep.subr.mxu0 0.0
        %1980 = vmatpush1.msra.mxu0 %v1914
        %1981 = vmatprep.subr.mxu0 0.0
        %1982 = vmatpush1.msra.mxu0 %v1915
        %1983 = vmatprep.subr.mxu0 0.0
        %1984 = vmatpush1.msra.mxu0 %v1916
        %1985 = vmatprep.subr.mxu0 0.0
        %1986 = vmatpush1.msra.mxu0 %v1917
        %1987 = vmatprep.subr.mxu0 0.0
        %1988 = vmatpush1.msra.mxu0 %v1918
        %1989 = vmatprep.subr.mxu0 0.0
        %1990 = vmatpush1.msra.mxu0 %v1919
        %1991 = vmatprep.subr.mxu0 0.0
        %1992 = vmatpush1.msra.mxu0 %v1920
        %1993 = vmatprep.subr.mxu0 0.0
        %1994 = vmatpush1.msra.mxu0 %v1921
        %1995 = vmatprep.subr.mxu0 0.0
        %1996 = vmatpush1.msra.mxu0 %v1922
        %1997 = vmatprep.subr.mxu0 0.0
        %1998 = vmatpush1.msra.mxu0 %v1923
        %1999 = vmatprep.subr.mxu0 0.0
        %2000 = vmatpush1.msra.mxu0 %v1924
        %2001 = vmatprep.subr.mxu0 0.0
        %2002 = vmatpush1.msra.mxu0 %v1925
        %2003 = vmatprep.subr.mxu0 0.0
        %2004 = vmatpush1.msra.mxu0 %v1926
        %2005 = vmatprep.subr.mxu0 0.0
        %2006 = vmatpush1.msra.mxu0 %v1927
        %2007 = vmatprep.subr.mxu0 0.0
        %2008 = vmatpush1.msra.mxu0 %v1928
        %2009 = vmatprep.subr.mxu0 0.0
        %2010 = vmatpush1.msra.mxu0 %v1929
        %2011 = vmatprep.subr.mxu0 0.0
        %2012 = vmatpush1.msra.mxu0 %v1930
        %2013 = vmatprep.subr.mxu0 0.0
        %2014 = vmatpush1.msra.mxu0 %v1931
        %2015 = vmatprep.subr.mxu0 0.0
        %2016 = vmatpush1.msra.mxu0 %v1932
        %2017 = vmatprep.subr.mxu0 0.0
        %2018 = vmatpush1.msra.mxu0 %v1933
        %2019 = vmatprep.subr.mxu0 0.0
        %2020 = vmatpush1.msra.mxu0 %v1934
        %2021 = vmatprep.subr.mxu0 0.0
        %2022 = vmatpush1.msra.mxu0 %v1935
        %2023 = vmatprep.subr.mxu0 0.0
        %2024 = vmatpush1.msra.mxu0 %v1936
        %2025 = vmatprep.subr.mxu0 0.0
        %2026 = vmatpush1.msra.mxu0 %v1937
        %2027 = vmatprep.subr.mxu0 0.0
        %2028 = vmatpush1.msra.mxu0 %v1938
        %2029 = vmatprep.subr.mxu0 0.0
        %2030 = vmatpush1.msra.mxu0 %v1939
        %2031 = vmatprep.subr.mxu0 0.0
        %2032 = vmatpush1.msra.mxu0 %v1940
        %2033 = vmatprep.subr.mxu0 0.0
        %2034 = vmatpush1.msra.mxu0 %v1941
        %2035 = vmatprep.subr.mxu0 0.0
        %2036 = vmatpush1.msra.mxu0 %v1942
        %2037 = vmatprep.subr.mxu0 0.0
        %2038 = vmatpush1.msra.mxu0 %v1943
        %2039 = vmatprep.subr.mxu0 0.0
        %2040 = vmatpush1.msra.mxu0 %v1944
        %2041 = vmatprep.mubr.f32.mxu0 %v485
        %2042 = vmatmul.mubr.f32.gmra.mrb[0].mxu0 %v484
        %v2043 = vpop.f32.mrb[0].mxu0
        %v2044 = vadd.f32 0.0, %v2043
        %v2045 = vpop.f32.mrb[0].mxu0
        %2046 = vmatprep.mubr.f32.mxu0 %v489
        %2047 = vmatmul.mubr.f32.gmra.mrb[0].mxu0 %v488
        %v2048 = vpop.f32.mrb[0].mxu0
        %v2049 = vadd.f32 0.0, %v2048
        %v2050 = vpop.f32.mrb[0].mxu0
        %2051 = vmatprep.mubr.f32.mxu0 %v493
        %2052 = vmatmul.mubr.f32.gmra.mrb[0].mxu0 %v492
        %v2053 = vpop.f32.mrb[0].mxu0
        %v2054 = vadd.f32 0.0, %v2053
        %v2055 = vpop.f32.mrb[0].mxu0
        %2056 = vmatprep.mubr.f32.mxu0 %v497
        %2057 = vmatmul.mubr.f32.gmra.mrb[0].mxu0 %v496
        %v2058 = vpop.f32.mrb[0].mxu0
        %v2059 = vadd.f32 0.0, %v2058
        %v2060 = vpop.f32.mrb[0].mxu0
        %2061 = vmatprep.mubr.f32.mxu0 %v501
        %2062 = vmatmul.mubr.f32.gmra.mrb[0].mxu0 %v500
        %v2063 = vpop.f32.mrb[0].mxu0
        %v2064 = vadd.f32 0.0, %v2063
        %v2065 = vpop.f32.mrb[0].mxu0
        %2066 = vmatprep.mubr.f32.mxu0 %v505
        %2067 = vmatmul.mubr.f32.gmra.mrb[0].mxu0 %v504
        %v2068 = vpop.f32.mrb[0].mxu0
        %v2069 = vadd.f32 0.0, %v2068
        %v2070 = vpop.f32.mrb[0].mxu0
        %2071 = vmatprep.mubr.f32.mxu0 %v509
        %2072 = vmatmul.mubr.f32.gmra.mrb[0].mxu0 %v508
        %v2073 = vpop.f32.mrb[0].mxu0
        %v2074 = vadd.f32 0.0, %v2073
        %v2075 = vpop.f32.mrb[0].mxu0
        %2076 = vmatprep.mubr.f32.mxu0 %v513
        %2077 = vmatmul.mubr.f32.gmra.mrb[0].mxu0 %v512
        %v2078 = vpop.f32.mrb[0].mxu0
        %v2079 = vadd.f32 0.0, %v2078
        %v2080 = vpop.f32.mrb[0].mxu0
        %2081 = vmatprep.mubr.f32.mxu0 %v517
        %2082 = vmatmul.mubr.f32.gmra.mrb[0].mxu0 %v516
        %v2083 = vpop.f32.mrb[0].mxu0
        %v2084 = vadd.f32 0.0, %v2083
        %v2085 = vpop.f32.mrb[0].mxu0
        %2086 = vmatprep.mubr.f32.mxu0 %v521
        %2087 = vmatmul.mubr.f32.gmra.mrb[0].mxu0 %v520
        %v2088 = vpop.f32.mrb[0].mxu0
        %v2089 = vadd.f32 0.0, %v2088
        %v2090 = vpop.f32.mrb[0].mxu0
        %2091 = vmatprep.mubr.f32.mxu0 %v525
        %2092 = vmatmul.mubr.f32.gmra.mrb[0].mxu0 %v524
        %v2093 = vpop.f32.mrb[0].mxu0
        %v2094 = vadd.f32 0.0, %v2093
        %v2095 = vpop.f32.mrb[0].mxu0
        %2096 = vmatprep.mubr.f32.mxu0 %v529
        %2097 = vmatmul.mubr.f32.gmra.mrb[0].mxu0 %v528
        %v2098 = vpop.f32.mrb[0].mxu0
        %v2099 = vadd.f32 0.0, %v2098
        %v2100 = vpop.f32.mrb[0].mxu0
        %2101 = vmatprep.mubr.f32.mxu0 %v533
        %2102 = vmatmul.mubr.f32.gmra.mrb[0].mxu0 %v532
        %v2103 = vpop.f32.mrb[0].mxu0
        %v2104 = vadd.f32 0.0, %v2103
        %v2105 = vpop.f32.mrb[0].mxu0
        %2106 = vmatprep.mubr.f32.mxu0 %v537
        %2107 = vmatmul.mubr.f32.gmra.mrb[0].mxu0 %v536
        %v2108 = vpop.f32.mrb[0].mxu0
        %v2109 = vadd.f32 0.0, %v2108
        %v2110 = vpop.f32.mrb[0].mxu0
        %2111 = vmatprep.mubr.f32.mxu0 %v541
        %2112 = vmatmul.mubr.f32.gmra.mrb[0].mxu0 %v540
        %v2113 = vpop.f32.mrb[0].mxu0
        %v2114 = vadd.f32 0.0, %v2113
        %v2115 = vpop.f32.mrb[0].mxu0
        %2116 = vmatprep.mubr.f32.mxu0 %v545
        %2117 = vmatmul.mubr.f32.gmra.mrb[0].mxu0 %v544
        %v2118 = vpop.f32.mrb[0].mxu0
        %v2119 = vadd.f32 0.0, %v2118
        %v2120 = vpop.f32.mrb[0].mxu0
        %2121 = vmatprep.mubr.f32.mxu0 %v549
        %2122 = vmatmul.mubr.f32.gmra.mrb[0].mxu0 %v548
        %v2123 = vpop.f32.mrb[0].mxu0
        %v2124 = vadd.f32 0.0, %v2123
        %v2125 = vpop.f32.mrb[0].mxu0
        %2126 = vmatprep.mubr.f32.mxu0 %v553
        %2127 = vmatmul.mubr.f32.gmra.mrb[0].mxu0 %v552
        %v2128 = vpop.f32.mrb[0].mxu0
        %v2129 = vadd.f32 0.0, %v2128
        %v2130 = vpop.f32.mrb[0].mxu0
        %2131 = vmatprep.mubr.f32.mxu0 %v557
        %2132 = vmatmul.mubr.f32.gmra.mrb[0].mxu0 %v556
        %v2133 = vpop.f32.mrb[0].mxu0
        %v2134 = vadd.f32 0.0, %v2133
        %v2135 = vpop.f32.mrb[0].mxu0
        %2136 = vmatprep.mubr.f32.mxu0 %v561
        %2137 = vmatmul.mubr.f32.gmra.mrb[0].mxu0 %v560
        %v2138 = vpop.f32.mrb[0].mxu0
        %v2139 = vadd.f32 0.0, %v2138
        %v2140 = vpop.f32.mrb[0].mxu0
        %2141 = vmatprep.mubr.f32.mxu0 %v565
        %2142 = vmatmul.mubr.f32.gmra.mrb[0].mxu0 %v564
        %v2143 = vpop.f32.mrb[0].mxu0
        %v2144 = vadd.f32 0.0, %v2143
        %v2145 = vpop.f32.mrb[0].mxu0
        %2146 = vmatprep.mubr.f32.mxu0 %v569
        %2147 = vmatmul.mubr.f32.gmra.mrb[0].mxu0 %v568
        %v2148 = vpop.f32.mrb[0].mxu0
        %v2149 = vadd.f32 0.0, %v2148
        %v2150 = vpop.f32.mrb[0].mxu0
        %2151 = vmatprep.mubr.f32.mxu0 %v573
        %2152 = vmatmul.mubr.f32.gmra.mrb[0].mxu0 %v572
        %v2153 = vpop.f32.mrb[0].mxu0
        %v2154 = vadd.f32 0.0, %v2153
        %v2155 = vpop.f32.mrb[0].mxu0
        %2156 = vmatprep.mubr.f32.mxu0 %v577
        %2157 = vmatmul.mubr.f32.gmra.mrb[0].mxu0 %v576
        %v2158 = vpop.f32.mrb[0].mxu0
        %v2159 = vadd.f32 0.0, %v2158
        %v2160 = vpop.f32.mrb[0].mxu0
        %2161 = vmatprep.mubr.f32.mxu0 %v581
        %2162 = vmatmul.mubr.f32.gmra.mrb[0].mxu0 %v580
        %v2163 = vpop.f32.mrb[0].mxu0
        %v2164 = vadd.f32 0.0, %v2163
        %v2165 = vpop.f32.mrb[0].mxu0
        %2166 = vmatprep.mubr.f32.mxu0 %v585
        %2167 = vmatmul.mubr.f32.gmra.mrb[0].mxu0 %v584
        %v2168 = vpop.f32.mrb[0].mxu0
        %v2169 = vadd.f32 0.0, %v2168
        %v2170 = vpop.f32.mrb[0].mxu0
        %2171 = vmatprep.mubr.f32.mxu0 %v589
        %2172 = vmatmul.mubr.f32.gmra.mrb[0].mxu0 %v588
        %v2173 = vpop.f32.mrb[0].mxu0
        %v2174 = vadd.f32 0.0, %v2173
        %v2175 = vpop.f32.mrb[0].mxu0
        %2176 = vmatprep.mubr.f32.mxu0 %v593
        %2177 = vmatmul.mubr.f32.gmra.mrb[0].mxu0 %v592
        %v2178 = vpop.f32.mrb[0].mxu0
        %v2179 = vadd.f32 0.0, %v2178
        %v2180 = vpop.f32.mrb[0].mxu0
        %2181 = vmatprep.mubr.f32.mxu0 %v597
        %2182 = vmatmul.mubr.f32.gmra.mrb[0].mxu0 %v596
        %v2183 = vpop.f32.mrb[0].mxu0
        %v2184 = vadd.f32 0.0, %v2183
        %v2185 = vpop.f32.mrb[0].mxu0
        %2186 = vmatprep.mubr.f32.mxu0 %v601
        %2187 = vmatmul.mubr.f32.gmra.mrb[0].mxu0 %v600
        %v2188 = vpop.f32.mrb[0].mxu0
        %v2189 = vadd.f32 0.0, %v2188
        %v2190 = vpop.f32.mrb[0].mxu0
        %2191 = vmatprep.mubr.f32.mxu0 %v605
        %2192 = vmatmul.mubr.f32.gmra.mrb[0].mxu0 %v604
        %v2193 = vpop.f32.mrb[0].mxu0
        %v2194 = vadd.f32 0.0, %v2193
        %v2195 = vpop.f32.mrb[0].mxu0
        %2196 = vmatprep.mubr.f32.mxu0 %v609
        %2197 = vmatmul.mubr.f32.gmra.mrb[0].mxu0 %v608
        %v2198 = vpop.f32.mrb[0].mxu0
        %v2199 = vadd.f32 0.0, %v2198
        %v2200 = vpop.f32.mrb[0].mxu0
        %2201 = vdwg.mxu0
        %2202 = vmatprep.subr.mxu0 0.0
        %2203 = vmatpush1.msra.mxu0 %v1945
        %2204 = vmatprep.subr.mxu0 0.0
        %2205 = vmatpush1.msra.mxu0 %v1946
        %2206 = vmatprep.subr.mxu0 0.0
        %2207 = vmatpush1.msra.mxu0 %v1947
        %2208 = vmatprep.subr.mxu0 0.0
        %2209 = vmatpush1.msra.mxu0 %v1948
        %2210 = vmatprep.subr.mxu0 0.0
        %2211 = vmatpush1.msra.mxu0 %v1949
        %2212 = vmatprep.subr.mxu0 0.0
        %2213 = vmatpush1.msra.mxu0 %v1950
        %2214 = vmatprep.subr.mxu0 0.0
        %2215 = vmatpush1.msra.mxu0 %v1951
        %2216 = vmatprep.subr.mxu0 0.0
        %2217 = vmatpush1.msra.mxu0 %v1952
        %2218 = vmatprep.subr.mxu0 0.0
        %2219 = vmatpush1.msra.mxu0 %v1953
        %2220 = vmatprep.subr.mxu0 0.0
        %2221 = vmatpush1.msra.mxu0 %v1954
        %2222 = vmatprep.subr.mxu0 0.0
        %2223 = vmatpush1.msra.mxu0 %v1955
        %2224 = vmatprep.subr.mxu0 0.0
        %2225 = vmatpush1.msra.mxu0 %v1956
        %2226 = vmatprep.subr.mxu0 0.0
        %2227 = vmatpush1.msra.mxu0 %v1957
        %2228 = vmatprep.subr.mxu0 0.0
        %2229 = vmatpush1.msra.mxu0 %v1958
        %2230 = vmatprep.subr.mxu0 0.0
        %2231 = vmatpush1.msra.mxu0 %v1959
        %2232 = vmatprep.subr.mxu0 0.0
        %2233 = vmatpush1.msra.mxu0 %v1960
        %2234 = vmatprep.subr.mxu0 0.0
        %2235 = vmatpush1.msra.mxu0 %v1961
        %2236 = vmatprep.subr.mxu0 0.0
        %2237 = vmatpush1.msra.mxu0 %v1962
        %2238 = vmatprep.subr.mxu0 0.0
        %2239 = vmatpush1.msra.mxu0 %v1963
        %2240 = vmatprep.subr.mxu0 0.0
        %2241 = vmatpush1.msra.mxu0 %v1964
        %2242 = vmatprep.subr.mxu0 0.0
        %2243 = vmatpush1.msra.mxu0 %v1965
        %2244 = vmatprep.subr.mxu0 0.0
        %2245 = vmatpush1.msra.mxu0 %v1966
        %2246 = vmatprep.subr.mxu0 0.0
        %2247 = vmatpush1.msra.mxu0 %v1967
        %2248 = vmatprep.subr.mxu0 0.0
        %2249 = vmatpush1.msra.mxu0 %v1968
        %2250 = vmatprep.subr.mxu0 0.0
        %2251 = vmatpush1.msra.mxu0 %v1969
        %2252 = vmatprep.subr.mxu0 0.0
        %2253 = vmatpush1.msra.mxu0 %v1970
        %2254 = vmatprep.subr.mxu0 0.0
        %2255 = vmatpush1.msra.mxu0 %v1971
        %2256 = vmatprep.subr.mxu0 0.0
        %2257 = vmatpush1.msra.mxu0 %v1972
        %2258 = vmatprep.subr.mxu0 0.0
        %2259 = vmatpush1.msra.mxu0 %v1973
        %2260 = vmatprep.subr.mxu0 0.0
        %2261 = vmatpush1.msra.mxu0 %v1974
        %2262 = vmatprep.subr.mxu0 0.0
        %2263 = vmatpush1.msra.mxu0 %v1975
        %2264 = vmatprep.subr.mxu0 0.0
        %2265 = vmatpush1.msra.mxu0 %v1976
        %2266 = vmatprep.mubr.f32.mxu0 %v487
        %2267 = vmatmul.mubr.f32.gmra.mrb[0].mxu0 %v486
        %v2268 = vpop.f32.mrb[0].mxu0
        %v2269 = vadd.f32 %v2044, %v2268
        %v2270 = vpop.f32.mrb[0].mxu0
        %2271 = vmatprep.mubr.f32.mxu0 %v491
        %2272 = vmatmul.mubr.f32.gmra.mrb[0].mxu0 %v490
        %v2273 = vpop.f32.mrb[0].mxu0
        %v2274 = vadd.f32 %v2049, %v2273
        %v2275 = vpop.f32.mrb[0].mxu0
        %2276 = vmatprep.mubr.f32.mxu0 %v495
        %2277 = vmatmul.mubr.f32.gmra.mrb[0].mxu0 %v494
        %v2278 = vpop.f32.mrb[0].mxu0
        %v2279 = vadd.f32 %v2054, %v2278
        %v2280 = vpop.f32.mrb[0].mxu0
        %2281 = vmatprep.mubr.f32.mxu0 %v499
        %2282 = vmatmul.mubr.f32.gmra.mrb[0].mxu0 %v498
        %v2283 = vpop.f32.mrb[0].mxu0
        %v2284 = vadd.f32 %v2059, %v2283
        %v2285 = vpop.f32.mrb[0].mxu0
        %2286 = vmatprep.mubr.f32.mxu0 %v503
        %2287 = vmatmul.mubr.f32.gmra.mrb[0].mxu0 %v502
        %v2288 = vpop.f32.mrb[0].mxu0
        %v2289 = vadd.f32 %v2064, %v2288
        %v2290 = vpop.f32.mrb[0].mxu0
        %2291 = vmatprep.mubr.f32.mxu0 %v507
        %2292 = vmatmul.mubr.f32.gmra.mrb[0].mxu0 %v506
        %v2293 = vpop.f32.mrb[0].mxu0
        %v2294 = vadd.f32 %v2069, %v2293
        %v2295 = vpop.f32.mrb[0].mxu0
        %2296 = vmatprep.mubr.f32.mxu0 %v511
        %2297 = vmatmul.mubr.f32.gmra.mrb[0].mxu0 %v510
        %v2298 = vpop.f32.mrb[0].mxu0
        %v2299 = vadd.f32 %v2074, %v2298
        %v2300 = vpop.f32.mrb[0].mxu0
        %2301 = vmatprep.mubr.f32.mxu0 %v515
        %2302 = vmatmul.mubr.f32.gmra.mrb[0].mxu0 %v514
        %v2303 = vpop.f32.mrb[0].mxu0
        %v2304 = vadd.f32 %v2079, %v2303
        %v2305 = vpop.f32.mrb[0].mxu0
        %2306 = vmatprep.mubr.f32.mxu0 %v519
        %2307 = vmatmul.mubr.f32.gmra.mrb[0].mxu0 %v518
        %v2308 = vpop.f32.mrb[0].mxu0
        %v2309 = vadd.f32 %v2084, %v2308
        %v2310 = vpop.f32.mrb[0].mxu0
        %2311 = vmatprep.mubr.f32.mxu0 %v523
        %2312 = vmatmul.mubr.f32.gmra.mrb[0].mxu0 %v522
        %v2313 = vpop.f32.mrb[0].mxu0
        %v2314 = vadd.f32 %v2089, %v2313
        %v2315 = vpop.f32.mrb[0].mxu0
        %2316 = vmatprep.mubr.f32.mxu0 %v527
        %2317 = vmatmul.mubr.f32.gmra.mrb[0].mxu0 %v526
        %v2318 = vpop.f32.mrb[0].mxu0
        %v2319 = vadd.f32 %v2094, %v2318
        %v2320 = vpop.f32.mrb[0].mxu0
        %2321 = vmatprep.mubr.f32.mxu0 %v531
        %2322 = vmatmul.mubr.f32.gmra.mrb[0].mxu0 %v530
        %v2323 = vpop.f32.mrb[0].mxu0
        %v2324 = vadd.f32 %v2099, %v2323
        %v2325 = vpop.f32.mrb[0].mxu0
        %2326 = vmatprep.mubr.f32.mxu0 %v535
        %2327 = vmatmul.mubr.f32.gmra.mrb[0].mxu0 %v534
        %v2328 = vpop.f32.mrb[0].mxu0
        %v2329 = vadd.f32 %v2104, %v2328
        %v2330 = vpop.f32.mrb[0].mxu0
        %2331 = vmatprep.mubr.f32.mxu0 %v539
        %2332 = vmatmul.mubr.f32.gmra.mrb[0].mxu0 %v538
        %v2333 = vpop.f32.mrb[0].mxu0
        %v2334 = vadd.f32 %v2109, %v2333
        %v2335 = vpop.f32.mrb[0].mxu0
        %2336 = vmatprep.mubr.f32.mxu0 %v543
        %2337 = vmatmul.mubr.f32.gmra.mrb[0].mxu0 %v542
        %v2338 = vpop.f32.mrb[0].mxu0
        %v2339 = vadd.f32 %v2114, %v2338
        %v2340 = vpop.f32.mrb[0].mxu0
        %2341 = vmatprep.mubr.f32.mxu0 %v547
        %2342 = vmatmul.mubr.f32.gmra.mrb[0].mxu0 %v546
        %v2343 = vpop.f32.mrb[0].mxu0
        %v2344 = vadd.f32 %v2119, %v2343
        %v2345 = vpop.f32.mrb[0].mxu0
        %2346 = vmatprep.mubr.f32.mxu0 %v551
        %2347 = vmatmul.mubr.f32.gmra.mrb[0].mxu0 %v550
        %v2348 = vpop.f32.mrb[0].mxu0
        %v2349 = vadd.f32 %v2124, %v2348
        %v2350 = vpop.f32.mrb[0].mxu0
        %2351 = vmatprep.mubr.f32.mxu0 %v555
        %2352 = vmatmul.mubr.f32.gmra.mrb[0].mxu0 %v554
        %v2353 = vpop.f32.mrb[0].mxu0
        %v2354 = vadd.f32 %v2129, %v2353
        %v2355 = vpop.f32.mrb[0].mxu0
        %2356 = vmatprep.mubr.f32.mxu0 %v559
        %2357 = vmatmul.mubr.f32.gmra.mrb[0].mxu0 %v558
        %v2358 = vpop.f32.mrb[0].mxu0
        %v2359 = vadd.f32 %v2134, %v2358
        %v2360 = vpop.f32.mrb[0].mxu0
        %2361 = vmatprep.mubr.f32.mxu0 %v563
        %2362 = vmatmul.mubr.f32.gmra.mrb[0].mxu0 %v562
        %v2363 = vpop.f32.mrb[0].mxu0
        %v2364 = vadd.f32 %v2139, %v2363
        %v2365 = vpop.f32.mrb[0].mxu0
        %2366 = vmatprep.mubr.f32.mxu0 %v567
        %2367 = vmatmul.mubr.f32.gmra.mrb[0].mxu0 %v566
        %v2368 = vpop.f32.mrb[0].mxu0
        %v2369 = vadd.f32 %v2144, %v2368
        %v2370 = vpop.f32.mrb[0].mxu0
        %2371 = vmatprep.mubr.f32.mxu0 %v571
        %2372 = vmatmul.mubr.f32.gmra.mrb[0].mxu0 %v570
        %v2373 = vpop.f32.mrb[0].mxu0
        %v2374 = vadd.f32 %v2149, %v2373
        %v2375 = vpop.f32.mrb[0].mxu0
        %2376 = vmatprep.mubr.f32.mxu0 %v575
        %2377 = vmatmul.mubr.f32.gmra.mrb[0].mxu0 %v574
        %v2378 = vpop.f32.mrb[0].mxu0
        %v2379 = vadd.f32 %v2154, %v2378
        %v2380 = vpop.f32.mrb[0].mxu0
        %2381 = vmatprep.mubr.f32.mxu0 %v579
        %2382 = vmatmul.mubr.f32.gmra.mrb[0].mxu0 %v578
        %v2383 = vpop.f32.mrb[0].mxu0
        %v2384 = vadd.f32 %v2159, %v2383
        %v2385 = vpop.f32.mrb[0].mxu0
        %2386 = vmatprep.mubr.f32.mxu0 %v583
        %2387 = vmatmul.mubr.f32.gmra.mrb[0].mxu0 %v582
        %v2388 = vpop.f32.mrb[0].mxu0
        %v2389 = vadd.f32 %v2164, %v2388
        %v2390 = vpop.f32.mrb[0].mxu0
        %2391 = vmatprep.mubr.f32.mxu0 %v587
        %2392 = vmatmul.mubr.f32.gmra.mrb[0].mxu0 %v586
        %v2393 = vpop.f32.mrb[0].mxu0
        %v2394 = vadd.f32 %v2169, %v2393
        %v2395 = vpop.f32.mrb[0].mxu0
        %2396 = vmatprep.mubr.f32.mxu0 %v591
        %2397 = vmatmul.mubr.f32.gmra.mrb[0].mxu0 %v590
        %v2398 = vpop.f32.mrb[0].mxu0
        %v2399 = vadd.f32 %v2174, %v2398
        %v2400 = vpop.f32.mrb[0].mxu0
        %2401 = vmatprep.mubr.f32.mxu0 %v595
        %2402 = vmatmul.mubr.f32.gmra.mrb[0].mxu0 %v594
        %v2403 = vpop.f32.mrb[0].mxu0
        %v2404 = vadd.f32 %v2179, %v2403
        %v2405 = vpop.f32.mrb[0].mxu0
        %2406 = vmatprep.mubr.f32.mxu0 %v599
        %2407 = vmatmul.mubr.f32.gmra.mrb[0].mxu0 %v598
        %v2408 = vpop.f32.mrb[0].mxu0
        %v2409 = vadd.f32 %v2184, %v2408
        %v2410 = vpop.f32.mrb[0].mxu0
        %2411 = vmatprep.mubr.f32.mxu0 %v603
        %2412 = vmatmul.mubr.f32.gmra.mrb[0].mxu0 %v602
        %v2413 = vpop.f32.mrb[0].mxu0
        %v2414 = vadd.f32 %v2189, %v2413
        %v2415 = vpop.f32.mrb[0].mxu0
        %2416 = vmatprep.mubr.f32.mxu0 %v607
        %2417 = vmatmul.mubr.f32.gmra.mrb[0].mxu0 %v606
        %v2418 = vpop.f32.mrb[0].mxu0
        %v2419 = vadd.f32 %v2194, %v2418
        %v2420 = vpop.f32.mrb[0].mxu0
        %2421 = vmatprep.mubr.f32.mxu0 %v611
        %2422 = vmatmul.mubr.f32.gmra.mrb[0].mxu0 %v610
        %v2423 = vpop.f32.mrb[0].mxu0
        %v2424 = vadd.f32 %v2199, %v2423
        %v2425 = vpop.f32.mrb[0].mxu0
        %2426 = vdwg.mxu0
        %2428 = vset.pattern.permute.xlu0 0
        %2429 = vperm.xlu0 %2428, %v612
        %v2430 = vpop.permute.xlu0 %2429
        %2433 = vset.pattern.permute.xlu0 0
        %2434 = vperm.xlu0 %2433, %v613
        %v2435 = vpop.permute.xlu0 %2434
        %2438 = vset.pattern.permute.xlu0 0
        %2439 = vperm.xlu0 %2438, %v614
        %v2440 = vpop.permute.xlu0 %2439
        %2443 = vset.pattern.permute.xlu0 0
        %2444 = vperm.xlu0 %2443, %v615
        %v2445 = vpop.permute.xlu0 %2444
        %2448 = vset.pattern.permute.xlu0 0
        %2449 = vperm.xlu0 %2448, %v616
        %v2450 = vpop.permute.xlu0 %2449
        %2453 = vset.pattern.permute.xlu0 0
        %2454 = vperm.xlu0 %2453, %v617
        %v2455 = vpop.permute.xlu0 %2454
        %2458 = vset.pattern.permute.xlu0 0
        %2459 = vperm.xlu0 %2458, %v618
        %v2460 = vpop.permute.xlu0 %2459
        %2463 = vset.pattern.permute.xlu0 0
        %2464 = vperm.xlu0 %2463, %v619
        %v2465 = vpop.permute.xlu0 %2464
        %2468 = vset.pattern.permute.xlu0 0
        %2469 = vperm.xlu0 %2468, %v620
        %v2470 = vpop.permute.xlu0 %2469
        %2473 = vset.pattern.permute.xlu0 0
        %2474 = vperm.xlu0 %2473, %v621
        %v2475 = vpop.permute.xlu0 %2474
        %2478 = vset.pattern.permute.xlu0 0
        %2479 = vperm.xlu0 %2478, %v622
        %v2480 = vpop.permute.xlu0 %2479
        %2483 = vset.pattern.permute.xlu0 0
        %2484 = vperm.xlu0 %2483, %v623
        %v2485 = vpop.permute.xlu0 %2484
        %2488 = vset.pattern.permute.xlu0 0
        %2489 = vperm.xlu0 %2488, %v624
        %v2490 = vpop.permute.xlu0 %2489
        %2493 = vset.pattern.permute.xlu0 0
        %2494 = vperm.xlu0 %2493, %v625
        %v2495 = vpop.permute.xlu0 %2494
        %2498 = vset.pattern.permute.xlu0 0
        %2499 = vperm.xlu0 %2498, %v626
        %v2500 = vpop.permute.xlu0 %2499
        %2503 = vset.pattern.permute.xlu0 0
        %2504 = vperm.xlu0 %2503, %v627
        %v2505 = vpop.permute.xlu0 %2504
        %2508 = vset.pattern.permute.xlu0 0
        %2509 = vperm.xlu0 %2508, %v628
        %v2510 = vpop.permute.xlu0 %2509
        %2513 = vset.pattern.permute.xlu0 0
        %2514 = vperm.xlu0 %2513, %v629
        %v2515 = vpop.permute.xlu0 %2514
        %2518 = vset.pattern.permute.xlu0 0
        %2519 = vperm.xlu0 %2518, %v630
        %v2520 = vpop.permute.xlu0 %2519
        %2523 = vset.pattern.permute.xlu0 0
        %2524 = vperm.xlu0 %2523, %v631
        %v2525 = vpop.permute.xlu0 %2524
        %2528 = vset.pattern.permute.xlu0 0
        %2529 = vperm.xlu0 %2528, %v632
        %v2530 = vpop.permute.xlu0 %2529
        %2533 = vset.pattern.permute.xlu0 0
        %2534 = vperm.xlu0 %2533, %v633
        %v2535 = vpop.permute.xlu0 %2534
        %2538 = vset.pattern.permute.xlu0 0
        %2539 = vperm.xlu0 %2538, %v634
        %v2540 = vpop.permute.xlu0 %2539
        %2543 = vset.pattern.permute.xlu0 0
        %2544 = vperm.xlu0 %2543, %v635
        %v2545 = vpop.permute.xlu0 %2544
        %2548 = vset.pattern.permute.xlu0 0
        %2549 = vperm.xlu0 %2548, %v636
        %v2550 = vpop.permute.xlu0 %2549
        %2553 = vset.pattern.permute.xlu0 0
        %2554 = vperm.xlu0 %2553, %v637
        %v2555 = vpop.permute.xlu0 %2554
        %2558 = vset.pattern.permute.xlu0 0
        %2559 = vperm.xlu0 %2558, %v638
        %v2560 = vpop.permute.xlu0 %2559
        %2563 = vset.pattern.permute.xlu0 0
        %2564 = vperm.xlu0 %2563, %v639
        %v2565 = vpop.permute.xlu0 %2564
        %2568 = vset.pattern.permute.xlu0 0
        %2569 = vperm.xlu0 %2568, %v640
        %v2570 = vpop.permute.xlu0 %2569
        %2573 = vset.pattern.permute.xlu0 0
        %2574 = vperm.xlu0 %2573, %v641
        %v2575 = vpop.permute.xlu0 %2574
        %2578 = vset.pattern.permute.xlu0 0
        %2579 = vperm.xlu0 %2578, %v642
        %v2580 = vpop.permute.xlu0 %2579
        %2583 = vset.pattern.permute.xlu0 0
        %2584 = vperm.xlu0 %2583, %v643
        %v2585 = vpop.permute.xlu0 %2584
        %v2587 = vmul.f32 %v2430, %v2269
        %v2588 = vmul.f32 %v2435, %v2274
        %v2589 = vmul.f32 %v2440, %v2279
        %v2590 = vmul.f32 %v2445, %v2284
        %v2591 = vmul.f32 %v2450, %v2289
        %v2592 = vmul.f32 %v2455, %v2294
        %v2593 = vmul.f32 %v2460, %v2299
        %v2594 = vmul.f32 %v2465, %v2304
        %v2595 = vmul.f32 %v2470, %v2309
        %v2596 = vmul.f32 %v2475, %v2314
        %v2597 = vmul.f32 %v2480, %v2319
        %v2598 = vmul.f32 %v2485, %v2324
        %v2599 = vmul.f32 %v2490, %v2329
        %v2600 = vmul.f32 %v2495, %v2334
        %v2601 = vmul.f32 %v2500, %v2339
        %v2602 = vmul.f32 %v2505, %v2344
        %v2603 = vmul.f32 %v2510, %v2349
        %v2604 = vmul.f32 %v2515, %v2354
        %v2605 = vmul.f32 %v2520, %v2359
        %v2606 = vmul.f32 %v2525, %v2364
        %v2607 = vmul.f32 %v2530, %v2369
        %v2608 = vmul.f32 %v2535, %v2374
        %v2609 = vmul.f32 %v2540, %v2379
        %v2610 = vmul.f32 %v2545, %v2384
        %v2611 = vmul.f32 %v2550, %v2389
        %v2612 = vmul.f32 %v2555, %v2394
        %v2613 = vmul.f32 %v2560, %v2399
        %v2614 = vmul.f32 %v2565, %v2404
        %v2615 = vmul.f32 %v2570, %v2409
        %v2616 = vmul.f32 %v2575, %v2414
        %v2617 = vmul.f32 %v2580, %v2419
        %v2618 = vmul.f32 %v2585, %v2424
        %v2619 = vld [vmem:[%s6] sm:$0x1]
        %v2621 = vlaneseq
        %v2622 = vshrl.u32 %v2621, 7
        %v2623 = vsub.s32 0, %v2622
        %v2624 = vrot.slane %v2619, %v2623
        %v2626 = vadd.f32 %v2587, %v2624
        %v2627 = vadd.f32 %v2588, %v2624
        %v2628 = vadd.f32 %v2589, %v2624
        %v2629 = vadd.f32 %v2590, %v2624
        %v2630 = vadd.f32 %v2591, %v2624
        %v2631 = vadd.f32 %v2592, %v2624
        %v2632 = vadd.f32 %v2593, %v2624
        %v2633 = vadd.f32 %v2594, %v2624
        %v2634 = vadd.f32 %v2595, %v2624
        %v2635 = vadd.f32 %v2596, %v2624
        %v2636 = vadd.f32 %v2597, %v2624
        %v2637 = vadd.f32 %v2598, %v2624
        %v2638 = vadd.f32 %v2599, %v2624
        %v2639 = vadd.f32 %v2600, %v2624
        %v2640 = vadd.f32 %v2601, %v2624
        %v2641 = vadd.f32 %v2602, %v2624
        %v2642 = vadd.f32 %v2603, %v2624
        %v2643 = vadd.f32 %v2604, %v2624
        %v2644 = vadd.f32 %v2605, %v2624
        %v2645 = vadd.f32 %v2606, %v2624
        %v2646 = vadd.f32 %v2607, %v2624
        %v2647 = vadd.f32 %v2608, %v2624
        %v2648 = vadd.f32 %v2609, %v2624
        %v2649 = vadd.f32 %v2610, %v2624
        %v2650 = vadd.f32 %v2611, %v2624
        %v2651 = vadd.f32 %v2612, %v2624
        %v2652 = vadd.f32 %v2613, %v2624
        %v2653 = vadd.f32 %v2614, %v2624
        %v2654 = vadd.f32 %v2615, %v2624
        %v2655 = vadd.f32 %v2616, %v2624
        %v2656 = vadd.f32 %v2617, %v2624
        %v2657 = vadd.f32 %v2618, %v2624
        %2658 = vst [vmem:[%s321] sm:$0xff] %v2626
        %2659 = vst [vmem:[%s321 + $0x8] sm:$0xff] %v2627
        %2660 = vst [vmem:[%s321 + $0x10] sm:$0xff] %v2628
        %2661 = vst [vmem:[%s321 + $0x18] sm:$0xff] %v2629
        %2662 = vst [vmem:[%s321 + $0x20] sm:$0xff] %v2630
        %2663 = vst [vmem:[%s321 + $0x28] sm:$0xff] %v2631
        %2664 = vst [vmem:[%s321 + $0x30] sm:$0xff] %v2632
        %2665 = vst [vmem:[%s321 + $0x38] sm:$0xff] %v2633
        %2666 = vst [vmem:[%s321 + $0x40] sm:$0xff] %v2634
        %2667 = vst [vmem:[%s321 + $0x48] sm:$0xff] %v2635
        %2668 = vst [vmem:[%s321 + $0x50] sm:$0xff] %v2636
        %2669 = vst [vmem:[%s321 + $0x58] sm:$0xff] %v2637
        %2670 = vst [vmem:[%s321 + $0x60] sm:$0xff] %v2638
        %2671 = vst [vmem:[%s321 + $0x68] sm:$0xff] %v2639
        %2672 = vst [vmem:[%s321 + $0x70] sm:$0xff] %v2640
        %2673 = vst [vmem:[%s321 + $0x78] sm:$0xff] %v2641
        %2674 = vst [vmem:[%s321 + $0x80] sm:$0xff] %v2642
        %2675 = vst [vmem:[%s321 + $0x88] sm:$0xff] %v2643
        %2676 = vst [vmem:[%s321 + $0x90] sm:$0xff] %v2644
        %2677 = vst [vmem:[%s321 + $0x98] sm:$0xff] %v2645
        %2678 = vst [vmem:[%s321 + $0xa0] sm:$0xff] %v2646
        %2679 = vst [vmem:[%s321 + $0xa8] sm:$0xff] %v2647
        %2680 = vst [vmem:[%s321 + $0xb0] sm:$0xff] %v2648
        %2681 = vst [vmem:[%s321 + $0xb8] sm:$0xff] %v2649
        %2682 = vst [vmem:[%s321 + $0xc0] sm:$0xff] %v2650
        %2683 = vst [vmem:[%s321 + $0xc8] sm:$0xff] %v2651
        %2684 = vst [vmem:[%s321 + $0xd0] sm:$0xff] %v2652
        %2685 = vst [vmem:[%s321 + $0xd8] sm:$0xff] %v2653
        %2686 = vst [vmem:[%s321 + $0xe0] sm:$0xff] %v2654
        %2687 = vst [vmem:[%s321 + $0xe8] sm:$0xff] %v2655
        %2688 = vst [vmem:[%s321 + $0xf0] sm:$0xff] %v2656
        %2689 = vst [vmem:[%s321 + $0xf8] sm:$0xff] %v2657
      $region56: #{sage_forward.1} parent=47 // pred_fallthru
        _
      %s2690 = smul.u32 %s23, %s22
      %s2691 = smul.u32 32, %s2690
      %p2692 = scmp.lt.s32.totalorder %s2691, 63
      %s2693 = scalar_select %p2692, %s2691, 63
      %s2694 = smul.addr %s2693, 8
      %s2695 = scalar_lea.vmem %s7, %s2694
      // Predicated region
      $region57: #{sage_forward.1} parent=47 // pred_check
        %p2696 = pneg %p207
      $region58: #{sage_forward.1} parent=47 // pred_check_branch
        %2698 = sbr.rel (%p2696) target = $region60
      $region59: #{sage_forward.1} parent=47 // pred_region
        %s2699 = smul.u32 %s23, %s22
        %s2700 = smul.u32 32, %s2699
      $region60: #{sage_forward.1} parent=47 // pred_fallthru
        _
    $region48: #{sage_forward.1} parent=5 // pred_fallthru
      _
    %p2701 = scmp.le.s32.totalorder 2, %s13
    // Predicated region
    $region61: #{sage_forward.1} parent=5 // pred_check
      %p2702 = pneg %p2701
    $region62: #{sage_forward.1} parent=5 // pred_check_branch
      %2704 = sbr.rel (%p2702) target = $region64
    $region63: #{sage_forward.1} parent=5 // pred_region
      %s2705 = ssub.s32 %s13, 2
      // Predicated region
      $region65: #{sage_forward.1} parent=63 // pred_check
        %p2706 = pneg %p213
      $region66: #{sage_forward.1} parent=63 // pred_check_branch
        %2708 = sbr.rel (%p2706) target = $region68
      $region67: #{sage_forward.1} parent=63 // pred_region
        %s2709 = smul.u32 %s25, %s24
        %s2710 = smul.u32 32, %s2709
        %p2711 = scmp.lt.s32.totalorder %s2710, 63
        %s2712 = scalar_select %p2711, %s2710, 63
        %s2713 = smul.addr %s2712, 8
        %s2714 = scalar_lea.vmem %s7, %s2713
      $region68: #{sage_forward.1} parent=63 // pred_fallthru
        _
    $region64: #{sage_forward.1} parent=5 // pred_fallthru
      _
  $region6: #{sage_forward.1} parent=0 // loop_footer
    %s17 = sadd.s32 1, %s13
  $region7: #{sage_forward.1} parent=0 // loop_footer_branch
    %12 = sbr.rel target = $region3
  $region8: #{sage_forward.1} parent=0 // loop_exit
    _

</llo_original>
